<compile_context>
chip_gen: v7x
topology: tpu7x:2x2x1
jax: 0.10.0
libtpu: 0.0.40
codegen_flags: <defaults>
</compile_context>

<pallas_src>
import functools

import jax
import jax.numpy as jnp
from jax.experimental import pallas as pl
from jax.experimental.pallas import tpu as pltpu

# Make reference matmuls exact f32 so the Pallas kernels can be compared at
# tight tolerances.
jax.config.update("jax_default_matmul_precision", "highest")

_HIGH = jax.lax.Precision.HIGH
_HIGHEST = jax.lax.Precision.HIGHEST


def _round_up(x, m):
    return ((x + m - 1) // m) * m


# --------------------------------------------------------------------------
# Kernel 1: fused embedding gather + FM first/second-order terms + pooling.
# --------------------------------------------------------------------------
def _fm_gather_kernel(D, F, precision, ids_ref, vals_ref, tbl_ref, tblsq_ref,
                      feat_ref):
    # ids_ref:   (tB, F)        int32
    # vals_ref:  (tB, F)        f32
    # tbl_ref:   (V_pad, C_pad) f32  [:, :D]=second order, [:, D]=first, rest 0
    # tblsq_ref: (V_pad, C_pad) f32  elementwise square of tbl_ref
    # feat_ref:  (tB, C_pad)    f32  out: [:, :D]=pooled emb, [:, D]=fm logit
    ids = ids_ref[...]
    vals = vals_ref[...]
    tB = ids.shape[0]
    Vp = tbl_ref.shape[0]
    Cp = tbl_ref.shape[1]

    v_iota = jax.lax.broadcasted_iota(jnp.int32, (tB, Vp), 1)

    # Build scaled one-hot LHS matrices with VPU accumulates; only 2 MXU
    # matmuls total (exact even with duplicate ids within a row).
    W = jnp.zeros((tB, Vp), jnp.float32)    # W[b,v]  = sum_f vals_f  [id_f==v]
    W2 = jnp.zeros((tB, Vp), jnp.float32)   # W2[b,v] = sum_f vals_f^2[id_f==v]
    for f in range(F):                      # static unroll, F is small
        hot = v_iota == ids[:, f:f + 1]     # (tB, Vp) bool
        vf = vals[:, f:f + 1]               # (tB, 1)
        W = W + jnp.where(hot, vf, 0.0)
        W2 = W2 + jnp.where(hot, vf * vf, 0.0)

    psum = jnp.dot(W, tbl_ref[...], preferred_element_type=jnp.float32,
                   precision=precision)     # (tB, Cp) = sum_f vals*tbl[id]
    sqsum = jnp.dot(W2, tblsq_ref[...], preferred_element_type=jnp.float32,
                    precision=precision)    # (tB, Cp) = sum_f (vals*tbl[id])^2

    lane = jax.lax.broadcasted_iota(jnp.int32, (tB, Cp), 1)
    is_emb = lane < D
    # second_order = 0.5 * sum_d (pooled_d^2 - sum_square_d)
    second = 0.5 * jnp.sum(jnp.where(is_emb, psum * psum - sqsum, 0.0),
                           axis=1, keepdims=True)             # (tB, 1)
    # Column D already holds first_order; fold second_order into that column.
    # Padded columns (> D) stay exactly zero.  Store is 128-lane dense.
    feat_ref[...] = psum + jnp.where(lane == D, second, 0.0)


# --------------------------------------------------------------------------
# Kernel 2: deep MLP (Linear -> ReLU -> BatchNorm -> Dropout)* -> Linear,
# combined with the FM logit and a sigmoid.  Whole batch in one block so BN
# batch statistics match PyTorch semantics exactly.
# --------------------------------------------------------------------------
def _mlp_kernel(num_hidden, D, apply_bn, *refs):
    feat_ref = refs[0]
    layer_refs = []
    idx = 1
    for _ in range(num_hidden):
        layer_refs.append(tuple(refs[idx:idx + 4]))   # (W, b, gamma, beta)
        idx += 4
    w_out_ref, b_out_ref, out_ref = refs[idx], refs[idx + 1], refs[idx + 2]

    feat = feat_ref[...]            # (B, C_pad)
    h = feat[:, :D]                 # pooled embedding (B, D)
    fm = feat[:, D:D + 1]           # first_order + second_order (B, 1)

    for (w_ref, b_ref, g_ref, be_ref) in layer_refs:
        h = jnp.dot(h, w_ref[...], preferred_element_type=jnp.float32,
                    precision=_HIGHEST) + b_ref[...]
        h = jnp.maximum(h, 0.0)
        if apply_bn:
            # BatchNorm1d(track_running_stats=False): batch stats, biased var,
            # eps=1e-5.  The PyTorch forward explicitly skips BN when B == 1.
            mean = jnp.mean(h, axis=0, keepdims=True)
            var = jnp.mean((h - mean) * (h - mean), axis=0, keepdims=True)
            h = (h - mean) * jax.lax.rsqrt(var + 1e-5) * g_ref[...] + be_ref[...]
        # TODO(synk): Dropout(0.1) implemented as identity (eval-mode semantics).

    deep = jnp.dot(h, w_out_ref[...], preferred_element_type=jnp.float32,
                   precision=_HIGHEST) + b_out_ref[...]       # (B, 1)
    logits = fm + deep
    out_ref[...] = pl.reciprocal(1.0 + jnp.exp(-logits))      # sigmoid


# --------------------------------------------------------------------------
# VMEM-aware sizing helpers
# --------------------------------------------------------------------------
def _vmem_limit_bytes():
    cap = None
    try:
        info = pltpu.get_tpu_info()
        cap = getattr(info, "vmem_capacity_bytes", None)
    except Exception:
        cap = None
    if not cap:
        cap = 64 * 1024 * 1024                 # conservative: v7x per-TC VMEM
    # <=48 MiB on v7x (64 MiB VMEM); up to 96 MiB on v5e/v6e (128 MiB VMEM).
    return int(min(96 * 1024 * 1024, max(32 * 1024 * 1024, 0.75 * cap)))


def _pick_tile_b(V_pad, C_pad, budget_bytes):
    # Fixed cost: both resident tables (count 2 buffers as worst case).
    fixed = 2 * 2 * V_pad * C_pad * 4
    for t in (8192, 4096, 2048, 1024, 512, 256, 128):
        per_tile = (2 * 2 * t * 128 * 4        # ids+vals, double-buffered, lane-padded
                    + 2 * t * C_pad * 4        # feat output, double-buffered
                    + 4 * t * V_pad * 4)       # W/W2 + elementwise temporaries
        if fixed + per_tile <= budget_bytes:
            return t
    return 128


# --------------------------------------------------------------------------
# Wrapper
# --------------------------------------------------------------------------
def deepfm_forward(feature_ids, feature_values, params, tile_b=None):
    """feature_ids: (B, F) int32, feature_values: (B, F) float32 -> (B,) float32."""
    first_tbl = params["first_order"]       # (V, 1)
    second_tbl = params["second_order"]     # (V, D)
    V, D = second_tbl.shape
    C = D + 1
    C_pad = _round_up(C, 128)
    V_pad = _round_up(V, 128)

    # Combined lane-dense table: [:, :D] = second order, [:, D] = first order.
    combined = jnp.zeros((V_pad, C_pad), jnp.float32)
    combined = combined.at[:V, :D].set(second_tbl.astype(jnp.float32))
    combined = combined.at[:V, D].set(first_tbl[:, 0].astype(jnp.float32))
    combined_sq = combined * combined

    B, F = feature_ids.shape
    # Clamp ids like jnp.take (out-of-range ids otherwise silently drop).
    ids = jnp.clip(feature_ids.astype(jnp.int32), 0, V - 1)
    vals = feature_values.astype(jnp.float32)

    vmem_limit = _vmem_limit_bytes()
    if tile_b is None:
        tile_b = _pick_tile_b(V_pad, C_pad, int(0.8 * vmem_limit))
    if B <= tile_b:
        tile_b = max(8, _round_up(B, 8))
    B_pad = _round_up(B, tile_b)
    if B_pad != B:                           # padded rows: vals == 0 -> zero rows
        ids = jnp.pad(ids, ((0, B_pad - B), (0, 0)))
        vals = jnp.pad(vals, ((0, B_pad - B), (0, 0)))
    grid = (B_pad // tile_b,)

    def build_fm_call(table_pipeline_mode, precision):
        tbl_kwargs = {}
        if table_pipeline_mode is not None:
            tbl_kwargs = dict(pipeline_mode=table_pipeline_mode)
        return pl.pallas_call(
            functools.partial(_fm_gather_kernel, D, F, precision),
            out_shape=jax.ShapeDtypeStruct((B_pad, C_pad), jnp.float32),
            grid=grid,
            in_specs=[
                pl.BlockSpec((tile_b, F), lambda i: (i, 0)),      # ids tile
                pl.BlockSpec((tile_b, F), lambda i: (i, 0)),      # values tile
                pl.BlockSpec((V_pad, C_pad), lambda i: (0, 0), **tbl_kwargs),
                pl.BlockSpec((V_pad, C_pad), lambda i: (0, 0), **tbl_kwargs),
            ],
            out_specs=pl.BlockSpec((tile_b, C_pad), lambda i: (i, 0)),
            compiler_params=pltpu.CompilerParams(
                dimension_semantics=("parallel",),                # megacore on v7x
                vmem_limit_bytes=vmem_limit,
            ),
        )

    try:
        feat = jax.block_until_ready(
            build_fm_call(pl.Buffered(1), _HIGH)(ids, vals, combined, combined_sq))
    except Exception:
        # Fallback: default pipelining + exact-precision matmuls.
        feat = build_fm_call(None, _HIGHEST)(ids, vals, combined, combined_sq)

    feat = feat[:B]                         # drop batch padding before BN

    hidden = params["hidden"]               # list of (W, b, gamma, beta)
    w_out, b_out = params["out"]
    inputs = [feat]
    for (Wh, bh, g, be) in hidden:
        inputs += [Wh, bh, g, be]
    inputs += [w_out, b_out]

    out = pl.pallas_call(
        functools.partial(_mlp_kernel, len(hidden), D, B > 1),
        out_shape=jax.ShapeDtypeStruct((B, 1), jnp.float32),
        in_specs=[pl.BlockSpec(memory_space=pltpu.MemorySpace.VMEM)
                  for _ in inputs],
        out_specs=pl.BlockSpec(memory_space=pltpu.MemorySpace.VMEM),
    )(*inputs)
    return out[:, 0]


# --------------------------------------------------------------------------
# Parameters / reference
# --------------------------------------------------------------------------
def init_params(key, num_features, embedding_dim, hidden_layers):
    keys = jax.random.split(key, 3 + 2 * len(hidden_layers))
    params = {
        "first_order": 0.1 * jax.random.normal(keys[0], (num_features, 1), jnp.float32),
        "second_order": 0.1 * jax.random.normal(keys[1], (num_features, embedding_dim),
                                                jnp.float32),
    }
    hidden = []
    in_dim = embedding_dim
    ki = 2
    for h_dim in hidden_layers:
        W = (1.0 / jnp.sqrt(in_dim)) * jax.random.normal(keys[ki], (in_dim, h_dim),
                                                         jnp.float32)
        b = 0.01 * jax.random.normal(keys[ki + 1], (1, h_dim), jnp.float32)
        gamma = jnp.ones((1, h_dim), jnp.float32)
        beta = jnp.zeros((1, h_dim), jnp.float32)
        hidden.append((W, b, gamma, beta))
        in_dim = h_dim
        ki += 2
    W_out = (1.0 / jnp.sqrt(in_dim)) * jax.random.normal(keys[ki], (in_dim, 1),
                                                         jnp.float32)
    b_out = jnp.zeros((1, 1), jnp.float32)
    params["hidden"] = hidden
    params["out"] = (W_out, b_out)
    return params


def deepfm_reference(feature_ids, feature_values, params):
    """Pure-JAX reference mirroring the PyTorch forward (eval-mode dropout)."""
    fow = jnp.take(params["first_order"], feature_ids, axis=0)[..., 0]
    first_order = jnp.sum(fow * feature_values, axis=1)
    emb = jnp.take(params["second_order"], feature_ids, axis=0)
    emb = emb * feature_values[:, :, None]
    pooled = jnp.sum(emb, axis=1)
    square_sum = pooled ** 2
    sum_square = jnp.sum(emb ** 2, axis=1)
    second_order = 0.5 * jnp.sum(square_sum - sum_square, axis=1)
    h = pooled
    for (W, b, g, be) in params["hidden"]:
        h = jnp.maximum(h @ W + b, 0.0)
        if h.shape[0] > 1:
            mean = jnp.mean(h, axis=0, keepdims=True)
            var = jnp.mean((h - mean) ** 2, axis=0, keepdims=True)
            h = (h - mean) / jnp.sqrt(var + 1e-5) * g + be
    W_out, b_out = params["out"]
    deep = (h @ W_out + b_out)[:, 0]
    return jax.nn.sigmoid(first_order + second_order + deep)


if __name__ == "__main__":
    key = jax.random.PRNGKey(0)
    B, F, V, D = 8, 8, 100, 32          # batch, fields, vocab (num_features), emb dim
    hidden_layers = [64, 32]

    k_ids, k_vals, k_params = jax.random.split(key, 3)
    feature_ids = jax.random.randint(k_ids, (B, F), 0, V, dtype=jnp.int32)
    feature_values = jax.random.uniform(k_vals, (B, F), dtype=jnp.float32)
    params = init_params(k_params, V, D, hidden_layers)

    out = deepfm_forward(feature_ids, feature_values, params)
    out = jax.block_until_ready(out)

    ref = deepfm_reference(feature_ids, feature_values, params)
    assert out.shape == (B,)
    assert jnp.allclose(out, ref, atol=2e-5, rtol=2e-5), (out, ref)

    print("KERNEL_OK")
</pallas_src>

<mosaic_0001>
module attributes {stable_mosaic.version = 11 : i64} {
  func.func @_fm_gather_kernel(%arg0: i32, %arg1: memref<8x8xi32, #tpu.memory_space<vmem>>, %arg2: memref<8x8xf32, #tpu.memory_space<vmem>>, %arg3: memref<128x128xf32, #tpu.memory_space<vmem>>, %arg4: memref<128x128xf32, #tpu.memory_space<vmem>>, %arg5: memref<8x128xf32, #tpu.memory_space<vmem>>) attributes {dimension_semantics = [#tpu.dimension_semantics<parallel>], iteration_bounds = array<i64: 1>, scalar_prefetch = 0 : i64, scratch_operands = 0 : i64, tpu.core_type = #tpu.core_type<tc>, window_params = [{transform_indices = @transform_0, window_bounds = array<i64: 8, 8>}, {transform_indices = @transform_1, window_bounds = array<i64: 8, 8>}, {pipeline_mode = #tpu.pipeline_mode<synchronous>, transform_indices = @transform_2, window_bounds = array<i64: 128, 128>}, {pipeline_mode = #tpu.pipeline_mode<synchronous>, transform_indices = @transform_3, window_bounds = array<i64: 128, 128>}, {transform_indices = @transform_4, window_bounds = array<i64: 8, 128>}]} {
    %c0 = arith.constant 0 : index
    %c0_0 = arith.constant 0 : index
    %0 = vector.load %arg1[%c0, %c0_0] : memref<8x8xi32, #tpu.memory_space<vmem>>, vector<8x8xi32>
    %c0_1 = arith.constant 0 : index
    %c0_2 = arith.constant 0 : index
    %1 = vector.load %arg2[%c0_1, %c0_2] : memref<8x8xf32, #tpu.memory_space<vmem>>, vector<8x8xf32>
    %2 = tpu.iota {dimensions = array<i32: 1>} : vector<8x128xi32>
    %cst = arith.constant 0.000000e+00 : f32
    %3 = vector.broadcast %cst : f32 to vector<8x128xf32>
    %cst_3 = arith.constant 0.000000e+00 : f32
    %4 = vector.broadcast %cst_3 : f32 to vector<8x128xf32>
    %5 = vector.extract_strided_slice %0 {offsets = [0, 0], sizes = [8, 1], strides = [1, 1]} : vector<8x8xi32> to vector<8x1xi32>
    %6 = vector.broadcast %5 : vector<8x1xi32> to vector<8x128xi32>
    %7 = arith.cmpi eq, %2, %6 : vector<8x128xi32>
    %8 = vector.extract_strided_slice %1 {offsets = [0, 0], sizes = [8, 1], strides = [1, 1]} : vector<8x8xf32> to vector<8x1xf32>
    %cst_4 = arith.constant 0.000000e+00 : f32
    %9 = vector.shape_cast %8 : vector<8x1xf32> to vector<8x1xf32>
    %10 = vector.broadcast %9 : vector<8x1xf32> to vector<8x128xf32>
    %11 = vector.broadcast %cst_4 : f32 to vector<8x128xf32>
    %12 = arith.select %7, %10, %11 : vector<8x128xi1>, vector<8x128xf32>
    %13 = arith.addf %3, %12 : vector<8x128xf32>
    %14 = arith.mulf %8, %8 : vector<8x1xf32>
    %cst_5 = arith.constant 0.000000e+00 : f32
    %15 = vector.shape_cast %14 : vector<8x1xf32> to vector<8x1xf32>
    %16 = vector.broadcast %15 : vector<8x1xf32> to vector<8x128xf32>
    %17 = vector.broadcast %cst_5 : f32 to vector<8x128xf32>
    %18 = arith.select %7, %16, %17 : vector<8x128xi1>, vector<8x128xf32>
    %19 = arith.addf %4, %18 : vector<8x128xf32>
    %20 = vector.extract_strided_slice %0 {offsets = [0, 1], sizes = [8, 1], strides = [1, 1]} : vector<8x8xi32> to vector<8x1xi32>
    %21 = vector.broadcast %20 : vector<8x1xi32> to vector<8x128xi32>
    %22 = arith.cmpi eq, %2, %21 : vector<8x128xi32>
    %23 = vector.extract_strided_slice %1 {offsets = [0, 1], sizes = [8, 1], strides = [1, 1]} : vector<8x8xf32> to vector<8x1xf32>
    %cst_6 = arith.constant 0.000000e+00 : f32
    %24 = vector.shape_cast %23 : vector<8x1xf32> to vector<8x1xf32>
    %25 = vector.broadcast %24 : vector<8x1xf32> to vector<8x128xf32>
    %26 = vector.broadcast %cst_6 : f32 to vector<8x128xf32>
    %27 = arith.select %22, %25, %26 : vector<8x128xi1>, vector<8x128xf32>
    %28 = arith.addf %13, %27 : vector<8x128xf32>
    %29 = arith.mulf %23, %23 : vector<8x1xf32>
    %cst_7 = arith.constant 0.000000e+00 : f32
    %30 = vector.shape_cast %29 : vector<8x1xf32> to vector<8x1xf32>
    %31 = vector.broadcast %30 : vector<8x1xf32> to vector<8x128xf32>
    %32 = vector.broadcast %cst_7 : f32 to vector<8x128xf32>
    %33 = arith.select %22, %31, %32 : vector<8x128xi1>, vector<8x128xf32>
    %34 = arith.addf %19, %33 : vector<8x128xf32>
    %35 = vector.extract_strided_slice %0 {offsets = [0, 2], sizes = [8, 1], strides = [1, 1]} : vector<8x8xi32> to vector<8x1xi32>
    %36 = vector.broadcast %35 : vector<8x1xi32> to vector<8x128xi32>
    %37 = arith.cmpi eq, %2, %36 : vector<8x128xi32>
    %38 = vector.extract_strided_slice %1 {offsets = [0, 2], sizes = [8, 1], strides = [1, 1]} : vector<8x8xf32> to vector<8x1xf32>
    %cst_8 = arith.constant 0.000000e+00 : f32
    %39 = vector.shape_cast %38 : vector<8x1xf32> to vector<8x1xf32>
    %40 = vector.broadcast %39 : vector<8x1xf32> to vector<8x128xf32>
    %41 = vector.broadcast %cst_8 : f32 to vector<8x128xf32>
    %42 = arith.select %37, %40, %41 : vector<8x128xi1>, vector<8x128xf32>
    %43 = arith.addf %28, %42 : vector<8x128xf32>
    %44 = arith.mulf %38, %38 : vector<8x1xf32>
    %cst_9 = arith.constant 0.000000e+00 : f32
    %45 = vector.shape_cast %44 : vector<8x1xf32> to vector<8x1xf32>
    %46 = vector.broadcast %45 : vector<8x1xf32> to vector<8x128xf32>
    %47 = vector.broadcast %cst_9 : f32 to vector<8x128xf32>
    %48 = arith.select %37, %46, %47 : vector<8x128xi1>, vector<8x128xf32>
    %49 = arith.addf %34, %48 : vector<8x128xf32>
    %50 = vector.extract_strided_slice %0 {offsets = [0, 3], sizes = [8, 1], strides = [1, 1]} : vector<8x8xi32> to vector<8x1xi32>
    %51 = vector.broadcast %50 : vector<8x1xi32> to vector<8x128xi32>
    %52 = arith.cmpi eq, %2, %51 : vector<8x128xi32>
    %53 = vector.extract_strided_slice %1 {offsets = [0, 3], sizes = [8, 1], strides = [1, 1]} : vector<8x8xf32> to vector<8x1xf32>
    %cst_10 = arith.constant 0.000000e+00 : f32
    %54 = vector.shape_cast %53 : vector<8x1xf32> to vector<8x1xf32>
    %55 = vector.broadcast %54 : vector<8x1xf32> to vector<8x128xf32>
    %56 = vector.broadcast %cst_10 : f32 to vector<8x128xf32>
    %57 = arith.select %52, %55, %56 : vector<8x128xi1>, vector<8x128xf32>
    %58 = arith.addf %43, %57 : vector<8x128xf32>
    %59 = arith.mulf %53, %53 : vector<8x1xf32>
    %cst_11 = arith.constant 0.000000e+00 : f32
    %60 = vector.shape_cast %59 : vector<8x1xf32> to vector<8x1xf32>
    %61 = vector.broadcast %60 : vector<8x1xf32> to vector<8x128xf32>
    %62 = vector.broadcast %cst_11 : f32 to vector<8x128xf32>
    %63 = arith.select %52, %61, %62 : vector<8x128xi1>, vector<8x128xf32>
    %64 = arith.addf %49, %63 : vector<8x128xf32>
    %65 = vector.extract_strided_slice %0 {offsets = [0, 4], sizes = [8, 1], strides = [1, 1]} : vector<8x8xi32> to vector<8x1xi32>
    %66 = vector.broadcast %65 : vector<8x1xi32> to vector<8x128xi32>
    %67 = arith.cmpi eq, %2, %66 : vector<8x128xi32>
    %68 = vector.extract_strided_slice %1 {offsets = [0, 4], sizes = [8, 1], strides = [1, 1]} : vector<8x8xf32> to vector<8x1xf32>
    %cst_12 = arith.constant 0.000000e+00 : f32
    %69 = vector.shape_cast %68 : vector<8x1xf32> to vector<8x1xf32>
    %70 = vector.broadcast %69 : vector<8x1xf32> to vector<8x128xf32>
    %71 = vector.broadcast %cst_12 : f32 to vector<8x128xf32>
    %72 = arith.select %67, %70, %71 : vector<8x128xi1>, vector<8x128xf32>
    %73 = arith.addf %58, %72 : vector<8x128xf32>
    %74 = arith.mulf %68, %68 : vector<8x1xf32>
    %cst_13 = arith.constant 0.000000e+00 : f32
    %75 = vector.shape_cast %74 : vector<8x1xf32> to vector<8x1xf32>
    %76 = vector.broadcast %75 : vector<8x1xf32> to vector<8x128xf32>
    %77 = vector.broadcast %cst_13 : f32 to vector<8x128xf32>
    %78 = arith.select %67, %76, %77 : vector<8x128xi1>, vector<8x128xf32>
    %79 = arith.addf %64, %78 : vector<8x128xf32>
    %80 = vector.extract_strided_slice %0 {offsets = [0, 5], sizes = [8, 1], strides = [1, 1]} : vector<8x8xi32> to vector<8x1xi32>
    %81 = vector.broadcast %80 : vector<8x1xi32> to vector<8x128xi32>
    %82 = arith.cmpi eq, %2, %81 : vector<8x128xi32>
    %83 = vector.extract_strided_slice %1 {offsets = [0, 5], sizes = [8, 1], strides = [1, 1]} : vector<8x8xf32> to vector<8x1xf32>
    %cst_14 = arith.constant 0.000000e+00 : f32
    %84 = vector.shape_cast %83 : vector<8x1xf32> to vector<8x1xf32>
    %85 = vector.broadcast %84 : vector<8x1xf32> to vector<8x128xf32>
    %86 = vector.broadcast %cst_14 : f32 to vector<8x128xf32>
    %87 = arith.select %82, %85, %86 : vector<8x128xi1>, vector<8x128xf32>
    %88 = arith.addf %73, %87 : vector<8x128xf32>
    %89 = arith.mulf %83, %83 : vector<8x1xf32>
    %cst_15 = arith.constant 0.000000e+00 : f32
    %90 = vector.shape_cast %89 : vector<8x1xf32> to vector<8x1xf32>
    %91 = vector.broadcast %90 : vector<8x1xf32> to vector<8x128xf32>
    %92 = vector.broadcast %cst_15 : f32 to vector<8x128xf32>
    %93 = arith.select %82, %91, %92 : vector<8x128xi1>, vector<8x128xf32>
    %94 = arith.addf %79, %93 : vector<8x128xf32>
    %95 = vector.extract_strided_slice %0 {offsets = [0, 6], sizes = [8, 1], strides = [1, 1]} : vector<8x8xi32> to vector<8x1xi32>
    %96 = vector.broadcast %95 : vector<8x1xi32> to vector<8x128xi32>
    %97 = arith.cmpi eq, %2, %96 : vector<8x128xi32>
    %98 = vector.extract_strided_slice %1 {offsets = [0, 6], sizes = [8, 1], strides = [1, 1]} : vector<8x8xf32> to vector<8x1xf32>
    %cst_16 = arith.constant 0.000000e+00 : f32
    %99 = vector.shape_cast %98 : vector<8x1xf32> to vector<8x1xf32>
    %100 = vector.broadcast %99 : vector<8x1xf32> to vector<8x128xf32>
    %101 = vector.broadcast %cst_16 : f32 to vector<8x128xf32>
    %102 = arith.select %97, %100, %101 : vector<8x128xi1>, vector<8x128xf32>
    %103 = arith.addf %88, %102 : vector<8x128xf32>
    %104 = arith.mulf %98, %98 : vector<8x1xf32>
    %cst_17 = arith.constant 0.000000e+00 : f32
    %105 = vector.shape_cast %104 : vector<8x1xf32> to vector<8x1xf32>
    %106 = vector.broadcast %105 : vector<8x1xf32> to vector<8x128xf32>
    %107 = vector.broadcast %cst_17 : f32 to vector<8x128xf32>
    %108 = arith.select %97, %106, %107 : vector<8x128xi1>, vector<8x128xf32>
    %109 = arith.addf %94, %108 : vector<8x128xf32>
    %110 = vector.extract_strided_slice %0 {offsets = [0, 7], sizes = [8, 1], strides = [1, 1]} : vector<8x8xi32> to vector<8x1xi32>
    %111 = vector.broadcast %110 : vector<8x1xi32> to vector<8x128xi32>
    %112 = arith.cmpi eq, %2, %111 : vector<8x128xi32>
    %113 = vector.extract_strided_slice %1 {offsets = [0, 7], sizes = [8, 1], strides = [1, 1]} : vector<8x8xf32> to vector<8x1xf32>
    %cst_18 = arith.constant 0.000000e+00 : f32
    %114 = vector.shape_cast %113 : vector<8x1xf32> to vector<8x1xf32>
    %115 = vector.broadcast %114 : vector<8x1xf32> to vector<8x128xf32>
    %116 = vector.broadcast %cst_18 : f32 to vector<8x128xf32>
    %117 = arith.select %112, %115, %116 : vector<8x128xi1>, vector<8x128xf32>
    %118 = arith.addf %103, %117 : vector<8x128xf32>
    %119 = arith.mulf %113, %113 : vector<8x1xf32>
    %cst_19 = arith.constant 0.000000e+00 : f32
    %120 = vector.shape_cast %119 : vector<8x1xf32> to vector<8x1xf32>
    %121 = vector.broadcast %120 : vector<8x1xf32> to vector<8x128xf32>
    %122 = vector.broadcast %cst_19 : f32 to vector<8x128xf32>
    %123 = arith.select %112, %121, %122 : vector<8x128xi1>, vector<8x128xf32>
    %124 = arith.addf %109, %123 : vector<8x128xf32>
    %c0_20 = arith.constant 0 : index
    %c0_21 = arith.constant 0 : index
    %125 = vector.load %arg3[%c0_20, %c0_21] : memref<128x128xf32, #tpu.memory_space<vmem>>, vector<128x128xf32>
    %cst_22 = arith.constant dense<0.000000e+00> : vector<8x128xf32>
    %126 = tpu.matmul %118, %125, %cst_22 {dimension_numbers = #tpu.dot_dimension_numbers<[1], [0], [0], [1], [0, 0, 1, 1], [], []>, precision = #tpu.contract_precision<fp32>} : vector<8x128xf32>, vector<128x128xf32>, vector<8x128xf32> -> vector<8x128xf32>
    %c0_23 = arith.constant 0 : index
    %c0_24 = arith.constant 0 : index
    %127 = vector.load %arg4[%c0_23, %c0_24] : memref<128x128xf32, #tpu.memory_space<vmem>>, vector<128x128xf32>
    %cst_25 = arith.constant dense<0.000000e+00> : vector<8x128xf32>
    %128 = tpu.matmul %124, %127, %cst_25 {dimension_numbers = #tpu.dot_dimension_numbers<[1], [0], [0], [1], [0, 0, 1, 1], [], []>, precision = #tpu.contract_precision<fp32>} : vector<8x128xf32>, vector<128x128xf32>, vector<8x128xf32> -> vector<8x128xf32>
    %129 = tpu.iota {dimensions = array<i32: 1>} : vector<8x128xi32>
    %c32_i32 = arith.constant 32 : i32
    %130 = vector.broadcast %c32_i32 : i32 to vector<8x128xi32>
    %131 = arith.cmpi slt, %129, %130 : vector<8x128xi32>
    %132 = arith.mulf %126, %126 : vector<8x128xf32>
    %133 = arith.subf %132, %128 : vector<8x128xf32>
    %cst_26 = arith.constant 0.000000e+00 : f32
    %134 = vector.broadcast %cst_26 : f32 to vector<8x128xf32>
    %135 = arith.select %131, %133, %134 : vector<8x128xi1>, vector<8x128xf32>
    %cst_27 = arith.constant dense<0.000000e+00> : vector<8xf32>
    %136 = vector.multi_reduction <add>, %135, %cst_27 [1] : vector<8x128xf32> to vector<8xf32>
    %137 = vector.shape_cast %136 : vector<8xf32> to vector<8x1xf32>
    %cst_28 = arith.constant 5.000000e-01 : f32
    %138 = vector.broadcast %cst_28 : f32 to vector<8x1xf32>
    %139 = arith.mulf %138, %137 : vector<8x1xf32>
    %c32_i32_29 = arith.constant 32 : i32
    %140 = vector.broadcast %c32_i32_29 : i32 to vector<8x128xi32>
    %141 = arith.cmpi eq, %129, %140 : vector<8x128xi32>
    %cst_30 = arith.constant 0.000000e+00 : f32
    %142 = vector.shape_cast %139 : vector<8x1xf32> to vector<8x1xf32>
    %143 = vector.broadcast %142 : vector<8x1xf32> to vector<8x128xf32>
    %144 = vector.broadcast %cst_30 : f32 to vector<8x128xf32>
    %145 = arith.select %141, %143, %144 : vector<8x128xi1>, vector<8x128xf32>
    %146 = arith.addf %126, %145 : vector<8x128xf32>
    %c0_31 = arith.constant 0 : index
    %c0_32 = arith.constant 0 : index
    %147 = vector.load %arg5[%c0_31, %c0_32] : memref<8x128xf32, #tpu.memory_space<vmem>>, vector<8x128xf32>
    tpu.vector_store %arg5[%c0_31, %c0_32], %146 {strides = array<i32>} : memref<8x128xf32, #tpu.memory_space<vmem>>, vector<8x128xf32>,
    return
  }
  func.func @transform_0(%arg0: i32) -> (i32, i32) {
    %c0_i32 = arith.constant 0 : i32
    %c0_i32_0 = arith.constant 0 : i32
    return %arg0, %c0_i32 : i32, i32
  }
  func.func @transform_1(%arg0: i32) -> (i32, i32) {
    %c0_i32 = arith.constant 0 : i32
    %c0_i32_0 = arith.constant 0 : i32
    return %arg0, %c0_i32 : i32, i32
  }
  func.func @transform_2(%arg0: i32) -> (i32, i32) {
    %c0_i32 = arith.constant 0 : i32
    %c0_i32_0 = arith.constant 0 : i32
    %c0_i32_1 = arith.constant 0 : i32
    return %c0_i32, %c0_i32_0 : i32, i32
  }
  func.func @transform_3(%arg0: i32) -> (i32, i32) {
    %c0_i32 = arith.constant 0 : i32
    %c0_i32_0 = arith.constant 0 : i32
    %c0_i32_1 = arith.constant 0 : i32
    return %c0_i32, %c0_i32_0 : i32, i32
  }
  func.func @transform_4(%arg0: i32) -> (i32, i32) {
    %c0_i32 = arith.constant 0 : i32
    %c0_i32_0 = arith.constant 0 : i32
    return %arg0, %c0_i32 : i32, i32
  }
}

</mosaic_0001>

<llo_original>
// kernel: tpu_custom_call.1
$region0: #{tpu_custom_call.1}
  #allocation0 [shape = 'u32[]', space=smem, size = 0x4, offset = 0x4, fixed_abs, tag = 'smem constant byte address 0x4 - core index']
  #allocation1 [shape = 'u32[144,128]{1,0:T(1,128)}', space=vmem, size = 0x12000, scoped, tag = 'internal scratch']
  %s0 = inlined_call_operand.hbm [shape: s32[8,8], index: 0, kind: input, shape index: {}]
  %s1 = inlined_call_operand.hbm [shape: f32[8,8], index: 1, kind: input, shape index: {}]
  %s2 = inlined_call_operand.hbm [shape: f32[128,128], index: 2, kind: input, shape index: {}]
  %s3 = inlined_call_operand.hbm [shape: f32[128,128], index: 3, kind: input, shape index: {}]
  %s4 = inlined_call_operand.hbm [shape: f32[8,128], index: 4, kind: output, shape index: {}]
  %s5 = sld [smem:[#allocation0]]
  $region42: #{tpu_custom_call.1} parent=0
    _
  %s7 = ssub.s32 1, %s5
  %s8 = scalar_select 0, %s7, %s5
  $region1: #{tpu_custom_call.1} parent=0
    #allocation2 [shape = 'u8[4096]{0}', space=vmem, size = 0x1000, scoped, tag = 'input window, operand 0, single buffered']
    #allocation3 [shape = 's32[1]{0}', space=sflag, size = 0x4, scoped, tag = 'scoped memory for tpu_custom_call.1']
    #allocation4 [shape = 's32[1]{0}', space=sflag, size = 0x4, scoped, tag = 'scoped memory for tpu_custom_call.1']
    #allocation5 [shape = 'u8[4096]{0}', space=vmem, size = 0x1000, scoped, tag = 'input window, operand 1, single buffered']
    #allocation6 [shape = 's32[1]{0}', space=sflag, size = 0x4, scoped, tag = 'scoped memory for tpu_custom_call.1']
    #allocation7 [shape = 'u8[65536]{0}', space=vmem, size = 0x10000, scoped, tag = 'input window, operand 2, single buffered']
    #allocation8 [shape = 'u8[65536]{0}', space=vmem, size = 0x10000, scoped, tag = 'input window, operand 3, single buffered']
    #allocation9 [shape = 's32[1]{0}', space=sflag, size = 0x4, scoped, tag = 'scoped memory for tpu_custom_call.1']
    #allocation10 [shape = 'u8[4096]{0}', space=vmem, size = 0x1000, scoped, tag = 'output window, operand 0, single buffered']
    %9 = vsyncpa [#allocation3], 0
    %10 = vsyncpa [#allocation6], 0
    %11 = vsyncpa [#allocation9], 0
    %12 = vsyncpa [#allocation4], 0
    // Predicated region
    $region2: #{tpu_custom_call.1} parent=1 // pred_check
      _
    $region3: #{tpu_custom_call.1} parent=1 // pred_check_branch
      %14 = sbr.rel (0) target = $region5
    $region4: #{tpu_custom_call.1} parent=1 // pred_region
      %s16 = ssub.s32 128, 128
      %17 = vsyncadd [#allocation3], %s16
      %s19 = sshll.u32 [#allocation2], 4
      %s20 = int_to_ptr.vmem [resolvable:$true] %s19
      %22 = dma.hbm_to_vmem [thread:$0]  %s0, 128, %s20, [#allocation3]
    $region5: #{tpu_custom_call.1} parent=1 // pred_fallthru
      _
    // Predicated region
    $region6: #{tpu_custom_call.1} parent=1 // pred_check
      _
    $region7: #{tpu_custom_call.1} parent=1 // pred_check_branch
      %24 = sbr.rel (0) target = $region9
    $region8: #{tpu_custom_call.1} parent=1 // pred_region
      %s26 = ssub.s32 128, 128
      %27 = vsyncadd [#allocation6], %s26
      %s29 = sshll.u32 [#allocation5], 4
      %s30 = int_to_ptr.vmem [resolvable:$true] %s29
      %32 = dma.hbm_to_vmem [thread:$0]  %s1, 128, %s30, [#allocation6]
    $region9: #{tpu_custom_call.1} parent=1 // pred_fallthru
      _
    // Predicated region
    $region10: #{tpu_custom_call.1} parent=1 // pred_check
      _
    $region11: #{tpu_custom_call.1} parent=1 // pred_check_branch
      %34 = sbr.rel (0) target = $region13
    $region12: #{tpu_custom_call.1} parent=1 // pred_region
      %s36 = ssub.s32 2048, 2048
      %37 = vsyncadd [#allocation6], %s36
      %s38 = sshll.u32 [#allocation7], 4
      %s39 = int_to_ptr.vmem [resolvable:$true] %s38
      %44 = dma.hbm_to_vmem [thread:$0]  %s2, 2048, %s39, [#allocation6], 128, 128, 8
    $region13: #{tpu_custom_call.1} parent=1 // pred_fallthru
      _
    // Predicated region
    $region14: #{tpu_custom_call.1} parent=1 // pred_check
      _
    $region15: #{tpu_custom_call.1} parent=1 // pred_check_branch
      %46 = sbr.rel (0) target = $region17
    $region16: #{tpu_custom_call.1} parent=1 // pred_region
      %s48 = ssub.s32 2048, 2048
      %49 = vsyncadd [#allocation9], %s48
      %s50 = sshll.u32 [#allocation8], 4
      %s51 = int_to_ptr.vmem [resolvable:$true] %s50
      %56 = dma.hbm_to_vmem [thread:$0]  %s3, 2048, %s51, [#allocation9], 128, 128, 8
    $region17: #{tpu_custom_call.1} parent=1 // pred_fallthru
      _
    // Predicated region
    $region18: #{tpu_custom_call.1} parent=1 // pred_check
      _
    $region19: #{tpu_custom_call.1} parent=1 // pred_check_branch
      %58 = sbr.rel (0) target = $region21
    $region20: #{tpu_custom_call.1} parent=1 // pred_region
      %59 = dma.done [#allocation3], 128
    $region21: #{tpu_custom_call.1} parent=1 // pred_fallthru
      _
    // Predicated region
    $region22: #{tpu_custom_call.1} parent=1 // pred_check
      _
    $region23: #{tpu_custom_call.1} parent=1 // pred_check_branch
      %61 = sbr.rel (0) target = $region25
    $region24: #{tpu_custom_call.1} parent=1 // pred_region
      %62 = dma.done [#allocation6], 128
    $region25: #{tpu_custom_call.1} parent=1 // pred_fallthru
      _
    // Predicated region
    $region26: #{tpu_custom_call.1} parent=1 // pred_check
      _
    $region27: #{tpu_custom_call.1} parent=1 // pred_check_branch
      %64 = sbr.rel (0) target = $region29
    $region28: #{tpu_custom_call.1} parent=1 // pred_region
      %65 = dma.done [#allocation6], 2048
    $region29: #{tpu_custom_call.1} parent=1 // pred_fallthru
      _
    // Predicated region
    $region30: #{tpu_custom_call.1} parent=1 // pred_check
      _
    $region31: #{tpu_custom_call.1} parent=1 // pred_check_branch
      %67 = sbr.rel (0) target = $region33
    $region32: #{tpu_custom_call.1} parent=1 // pred_region
      %68 = dma.done [#allocation9], 2048
    $region33: #{tpu_custom_call.1} parent=1 // pred_fallthru
      _
    %v69 = vld [vmem:[#allocation2] sm:$0xff]
    %v70 = vld [vmem:[#allocation5] sm:$0xff]
    %v71 = vlaneseq
    %v72 = vand.u32 %v71, 127
    %73 = vset.pattern.permute.xlu0 0
    %74 = vperm.xlu0 %73, %v69
    %v75 = vpop.permute.xlu0 %74
    %vm76 = vcmp.eq.s32.totalorder %v72, %v75
    %78 = vset.pattern.permute.xlu0 0
    %79 = vperm.xlu0 %78, %v70
    %v80 = vpop.permute.xlu0 %79
    %v82 = vsel %vm76, %v80, 0.0
    %v83 = vadd.f32 %v82, 0.0
    %v84 = vmul.f32 %v70, %v70
    %86 = vset.pattern.permute.xlu0 0
    %87 = vperm.xlu0 %86, %v84
    %v88 = vpop.permute.xlu0 %87
    %v90 = vsel %vm76, %v88, 0.0
    %v91 = vadd.f32 %v90, 0.0
    %92 = vset.pattern.permute.xlu0 1
    %93 = vperm.xlu0 %92, %v69
    %v94 = vpop.permute.xlu0 %93
    %vm95 = vcmp.eq.s32.totalorder %v72, %v94
    %96 = vset.pattern.permute.xlu0 1
    %97 = vperm.xlu0 %96, %v70
    %v98 = vpop.permute.xlu0 %97
    %v100 = vsel %vm95, %v98, 0.0
    %v101 = vadd.f32 %v83, %v100
    %102 = vset.pattern.permute.xlu0 1
    %103 = vperm.xlu0 %102, %v84
    %v104 = vpop.permute.xlu0 %103
    %v106 = vsel %vm95, %v104, 0.0
    %v107 = vadd.f32 %v91, %v106
    %108 = vset.pattern.permute.xlu0 2
    %109 = vperm.xlu0 %108, %v69
    %v110 = vpop.permute.xlu0 %109
    %vm111 = vcmp.eq.s32.totalorder %v72, %v110
    %112 = vset.pattern.permute.xlu0 2
    %113 = vperm.xlu0 %112, %v70
    %v114 = vpop.permute.xlu0 %113
    %v116 = vsel %vm111, %v114, 0.0
    %v117 = vadd.f32 %v101, %v116
    %118 = vset.pattern.permute.xlu0 2
    %119 = vperm.xlu0 %118, %v84
    %v120 = vpop.permute.xlu0 %119
    %v122 = vsel %vm111, %v120, 0.0
    %v123 = vadd.f32 %v107, %v122
    %124 = vset.pattern.permute.xlu0 3
    %125 = vperm.xlu0 %124, %v69
    %v126 = vpop.permute.xlu0 %125
    %vm127 = vcmp.eq.s32.totalorder %v72, %v126
    %128 = vset.pattern.permute.xlu0 3
    %129 = vperm.xlu0 %128, %v70
    %v130 = vpop.permute.xlu0 %129
    %v132 = vsel %vm127, %v130, 0.0
    %v133 = vadd.f32 %v117, %v132
    %134 = vset.pattern.permute.xlu0 3
    %135 = vperm.xlu0 %134, %v84
    %v136 = vpop.permute.xlu0 %135
    %v138 = vsel %vm127, %v136, 0.0
    %v139 = vadd.f32 %v123, %v138
    %140 = vset.pattern.permute.xlu0 4
    %141 = vperm.xlu0 %140, %v69
    %v142 = vpop.permute.xlu0 %141
    %vm143 = vcmp.eq.s32.totalorder %v72, %v142
    %144 = vset.pattern.permute.xlu0 4
    %145 = vperm.xlu0 %144, %v70
    %v146 = vpop.permute.xlu0 %145
    %v148 = vsel %vm143, %v146, 0.0
    %v149 = vadd.f32 %v133, %v148
    %150 = vset.pattern.permute.xlu0 4
    %151 = vperm.xlu0 %150, %v84
    %v152 = vpop.permute.xlu0 %151
    %v154 = vsel %vm143, %v152, 0.0
    %v155 = vadd.f32 %v139, %v154
    %156 = vset.pattern.permute.xlu0 5
    %157 = vperm.xlu0 %156, %v69
    %v158 = vpop.permute.xlu0 %157
    %vm159 = vcmp.eq.s32.totalorder %v72, %v158
    %160 = vset.pattern.permute.xlu0 5
    %161 = vperm.xlu0 %160, %v70
    %v162 = vpop.permute.xlu0 %161
    %v164 = vsel %vm159, %v162, 0.0
    %v165 = vadd.f32 %v149, %v164
    %166 = vset.pattern.permute.xlu0 5
    %167 = vperm.xlu0 %166, %v84
    %v168 = vpop.permute.xlu0 %167
    %v170 = vsel %vm159, %v168, 0.0
    %v171 = vadd.f32 %v155, %v170
    %172 = vset.pattern.permute.xlu0 6
    %173 = vperm.xlu0 %172, %v69
    %v174 = vpop.permute.xlu0 %173
    %vm175 = vcmp.eq.s32.totalorder %v72, %v174
    %176 = vset.pattern.permute.xlu0 6
    %177 = vperm.xlu0 %176, %v70
    %v178 = vpop.permute.xlu0 %177
    %v180 = vsel %vm175, %v178, 0.0
    %v181 = vadd.f32 %v165, %v180
    %182 = vset.pattern.permute.xlu0 6
    %183 = vperm.xlu0 %182, %v84
    %v184 = vpop.permute.xlu0 %183
    %v186 = vsel %vm175, %v184, 0.0
    %v187 = vadd.f32 %v171, %v186
    %188 = vset.pattern.permute.xlu0 7
    %189 = vperm.xlu0 %188, %v69
    %v190 = vpop.permute.xlu0 %189
    %vm191 = vcmp.eq.s32.totalorder %v72, %v190
    %192 = vset.pattern.permute.xlu0 7
    %193 = vperm.xlu0 %192, %v70
    %v194 = vpop.permute.xlu0 %193
    %v196 = vsel %vm191, %v194, 0.0
    %v197 = vadd.f32 %v181, %v196
    %198 = vset.pattern.permute.xlu0 7
    %199 = vperm.xlu0 %198, %v84
    %v200 = vpop.permute.xlu0 %199
    %v202 = vsel %vm191, %v200, 0.0
    %v203 = vadd.f32 %v187, %v202
    %v204 = vld [vmem:[#allocation7] sm:$0xff]
    %v205 = vld [vmem:[#allocation7 + $0x8] sm:$0xff]
    %v206 = vld [vmem:[#allocation7 + $0x10] sm:$0xff]
    %v207 = vld [vmem:[#allocation7 + $0x18] sm:$0xff]
    %v208 = vld [vmem:[#allocation7 + $0x20] sm:$0xff]
    %v209 = vld [vmem:[#allocation7 + $0x28] sm:$0xff]
    %v210 = vld [vmem:[#allocation7 + $0x30] sm:$0xff]
    %v211 = vld [vmem:[#allocation7 + $0x38] sm:$0xff]
    %v212 = vld [vmem:[#allocation7 + $0x40] sm:$0xff]
    %v213 = vld [vmem:[#allocation7 + $0x48] sm:$0xff]
    %v214 = vld [vmem:[#allocation7 + $0x50] sm:$0xff]
    %v215 = vld [vmem:[#allocation7 + $0x58] sm:$0xff]
    %v216 = vld [vmem:[#allocation7 + $0x60] sm:$0xff]
    %v217 = vld [vmem:[#allocation7 + $0x68] sm:$0xff]
    %v218 = vld [vmem:[#allocation7 + $0x70] sm:$0xff]
    %v219 = vld [vmem:[#allocation7 + $0x78] sm:$0xff]
    %220 = vmatprep.subr.mxu0 0.0
    %v221 = vand.u32 %v204, 4294901760
    %222 = vmatpush1.msra.mxu0 %v221
    %223 = vmatprep.subr.mxu0 0.0
    %v224 = vand.u32 %v205, 4294901760
    %225 = vmatpush1.msra.mxu0 %v224
    %226 = vmatprep.subr.mxu0 0.0
    %v227 = vand.u32 %v206, 4294901760
    %228 = vmatpush1.msra.mxu0 %v227
    %229 = vmatprep.subr.mxu0 0.0
    %v230 = vand.u32 %v207, 4294901760
    %231 = vmatpush1.msra.mxu0 %v230
    %232 = vmatprep.subr.mxu0 0.0
    %v233 = vand.u32 %v208, 4294901760
    %234 = vmatpush1.msra.mxu0 %v233
    %235 = vmatprep.subr.mxu0 0.0
    %v236 = vand.u32 %v209, 4294901760
    %237 = vmatpush1.msra.mxu0 %v236
    %238 = vmatprep.subr.mxu0 0.0
    %v239 = vand.u32 %v210, 4294901760
    %240 = vmatpush1.msra.mxu0 %v239
    %241 = vmatprep.subr.mxu0 0.0
    %v242 = vand.u32 %v211, 4294901760
    %243 = vmatpush1.msra.mxu0 %v242
    %244 = vmatprep.subr.mxu0 0.0
    %v245 = vand.u32 %v212, 4294901760
    %246 = vmatpush1.msra.mxu0 %v245
    %247 = vmatprep.subr.mxu0 0.0
    %v248 = vand.u32 %v213, 4294901760
    %249 = vmatpush1.msra.mxu0 %v248
    %250 = vmatprep.subr.mxu0 0.0
    %v251 = vand.u32 %v214, 4294901760
    %252 = vmatpush1.msra.mxu0 %v251
    %253 = vmatprep.subr.mxu0 0.0
    %v254 = vand.u32 %v215, 4294901760
    %255 = vmatpush1.msra.mxu0 %v254
    %256 = vmatprep.subr.mxu0 0.0
    %v257 = vand.u32 %v216, 4294901760
    %258 = vmatpush1.msra.mxu0 %v257
    %259 = vmatprep.subr.mxu0 0.0
    %v260 = vand.u32 %v217, 4294901760
    %261 = vmatpush1.msra.mxu0 %v260
    %262 = vmatprep.subr.mxu0 0.0
    %v263 = vand.u32 %v218, 4294901760
    %264 = vmatpush1.msra.mxu0 %v263
    %265 = vmatprep.subr.mxu0 0.0
    %v266 = vand.u32 %v219, 4294901760
    %267 = vmatpush1.msra.mxu0 %v266
    %268 = vmatprep.subr.mxu0 0.0
    %269 = vmatpush1.msra.mxu0 0.0
    %270 = vmatprep.subr.mxu0 0.0
    %271 = vmatpush1.msra.mxu0 0.0
    %272 = vmatprep.subr.mxu0 0.0
    %273 = vmatpush1.msra.mxu0 0.0
    %274 = vmatprep.subr.mxu0 0.0
    %275 = vmatpush1.msra.mxu0 0.0
    %276 = vmatprep.subr.mxu0 0.0
    %277 = vmatpush1.msra.mxu0 0.0
    %278 = vmatprep.subr.mxu0 0.0
    %279 = vmatpush1.msra.mxu0 0.0
    %280 = vmatprep.subr.mxu0 0.0
    %281 = vmatpush1.msra.mxu0 0.0
    %282 = vmatprep.subr.mxu0 0.0
    %283 = vmatpush1.msra.mxu0 0.0
    %284 = vmatprep.subr.mxu0 0.0
    %285 = vmatpush1.msra.mxu0 0.0
    %286 = vmatprep.subr.mxu0 0.0
    %287 = vmatpush1.msra.mxu0 0.0
    %288 = vmatprep.subr.mxu0 0.0
    %289 = vmatpush1.msra.mxu0 0.0
    %290 = vmatprep.subr.mxu0 0.0
    %291 = vmatpush1.msra.mxu0 0.0
    %292 = vmatprep.subr.mxu0 0.0
    %293 = vmatpush1.msra.mxu0 0.0
    %294 = vmatprep.subr.mxu0 0.0
    %295 = vmatpush1.msra.mxu0 0.0
    %296 = vmatprep.subr.mxu0 0.0
    %297 = vmatpush1.msra.mxu0 0.0
    %298 = vmatprep.subr.mxu0 0.0
    %299 = vmatpush1.msra.mxu0 0.0
    %300 = vmatprep.mubr.f32.mxu0 0.0
    %v301 = vand.u32 %v197, 4294901760
    %v302 = vsub.f32 %v197, %v301
    %v303 = vand.u32 %v302, 4294901760
    %v304 = vsub.f32 %v302, %v303
    %v305 = vand.u32 %v304, 4294901760
    %306 = vmatmul.mubr.f32.gmra.mrb[0].mxu0 %v305
    %v307 = vpop.f32.mrb[0].mxu0
    %v308 = vadd.f32 0.0, %v307
    %v309 = vpop.f32.mrb[0].mxu0
    %310 = vdwg.mxu0
    %311 = vmatprep.subr.mxu0 0.0
    %v312 = vand.u32 %v204, 4294901760
    %v313 = vsub.f32 %v204, %v312
    %v314 = vand.u32 %v313, 4294901760
    %v315 = vsub.f32 %v313, %v314
    %v316 = vand.u32 %v315, 4294901760
    %317 = vmatpush1.msra.mxu0 %v316
    %318 = vmatprep.subr.mxu0 0.0
    %v319 = vand.u32 %v205, 4294901760
    %v320 = vsub.f32 %v205, %v319
    %v321 = vand.u32 %v320, 4294901760
    %v322 = vsub.f32 %v320, %v321
    %v323 = vand.u32 %v322, 4294901760
    %324 = vmatpush1.msra.mxu0 %v323
    %325 = vmatprep.subr.mxu0 0.0
    %v326 = vand.u32 %v206, 4294901760
    %v327 = vsub.f32 %v206, %v326
    %v328 = vand.u32 %v327, 4294901760
    %v329 = vsub.f32 %v327, %v328
    %v330 = vand.u32 %v329, 4294901760
    %331 = vmatpush1.msra.mxu0 %v330
    %332 = vmatprep.subr.mxu0 0.0
    %v333 = vand.u32 %v207, 4294901760
    %v334 = vsub.f32 %v207, %v333
    %v335 = vand.u32 %v334, 4294901760
    %v336 = vsub.f32 %v334, %v335
    %v337 = vand.u32 %v336, 4294901760
    %338 = vmatpush1.msra.mxu0 %v337
    %339 = vmatprep.subr.mxu0 0.0
    %v340 = vand.u32 %v208, 4294901760
    %v341 = vsub.f32 %v208, %v340
    %v342 = vand.u32 %v341, 4294901760
    %v343 = vsub.f32 %v341, %v342
    %v344 = vand.u32 %v343, 4294901760
    %345 = vmatpush1.msra.mxu0 %v344
    %346 = vmatprep.subr.mxu0 0.0
    %v347 = vand.u32 %v209, 4294901760
    %v348 = vsub.f32 %v209, %v347
    %v349 = vand.u32 %v348, 4294901760
    %v350 = vsub.f32 %v348, %v349
    %v351 = vand.u32 %v350, 4294901760
    %352 = vmatpush1.msra.mxu0 %v351
    %353 = vmatprep.subr.mxu0 0.0
    %v354 = vand.u32 %v210, 4294901760
    %v355 = vsub.f32 %v210, %v354
    %v356 = vand.u32 %v355, 4294901760
    %v357 = vsub.f32 %v355, %v356
    %v358 = vand.u32 %v357, 4294901760
    %359 = vmatpush1.msra.mxu0 %v358
    %360 = vmatprep.subr.mxu0 0.0
    %v361 = vand.u32 %v211, 4294901760
    %v362 = vsub.f32 %v211, %v361
    %v363 = vand.u32 %v362, 4294901760
    %v364 = vsub.f32 %v362, %v363
    %v365 = vand.u32 %v364, 4294901760
    %366 = vmatpush1.msra.mxu0 %v365
    %367 = vmatprep.subr.mxu0 0.0
    %v368 = vand.u32 %v212, 4294901760
    %v369 = vsub.f32 %v212, %v368
    %v370 = vand.u32 %v369, 4294901760
    %v371 = vsub.f32 %v369, %v370
    %v372 = vand.u32 %v371, 4294901760
    %373 = vmatpush1.msra.mxu0 %v372
    %374 = vmatprep.subr.mxu0 0.0
    %v375 = vand.u32 %v213, 4294901760
    %v376 = vsub.f32 %v213, %v375
    %v377 = vand.u32 %v376, 4294901760
    %v378 = vsub.f32 %v376, %v377
    %v379 = vand.u32 %v378, 4294901760
    %380 = vmatpush1.msra.mxu0 %v379
    %381 = vmatprep.subr.mxu0 0.0
    %v382 = vand.u32 %v214, 4294901760
    %v383 = vsub.f32 %v214, %v382
    %v384 = vand.u32 %v383, 4294901760
    %v385 = vsub.f32 %v383, %v384
    %v386 = vand.u32 %v385, 4294901760
    %387 = vmatpush1.msra.mxu0 %v386
    %388 = vmatprep.subr.mxu0 0.0
    %v389 = vand.u32 %v215, 4294901760
    %v390 = vsub.f32 %v215, %v389
    %v391 = vand.u32 %v390, 4294901760
    %v392 = vsub.f32 %v390, %v391
    %v393 = vand.u32 %v392, 4294901760
    %394 = vmatpush1.msra.mxu0 %v393
    %395 = vmatprep.subr.mxu0 0.0
    %v396 = vand.u32 %v216, 4294901760
    %v397 = vsub.f32 %v216, %v396
    %v398 = vand.u32 %v397, 4294901760
    %v399 = vsub.f32 %v397, %v398
    %v400 = vand.u32 %v399, 4294901760
    %401 = vmatpush1.msra.mxu0 %v400
    %402 = vmatprep.subr.mxu0 0.0
    %v403 = vand.u32 %v217, 4294901760
    %v404 = vsub.f32 %v217, %v403
    %v405 = vand.u32 %v404, 4294901760
    %v406 = vsub.f32 %v404, %v405
    %v407 = vand.u32 %v406, 4294901760
    %408 = vmatpush1.msra.mxu0 %v407
    %409 = vmatprep.subr.mxu0 0.0
    %v410 = vand.u32 %v218, 4294901760
    %v411 = vsub.f32 %v218, %v410
    %v412 = vand.u32 %v411, 4294901760
    %v413 = vsub.f32 %v411, %v412
    %v414 = vand.u32 %v413, 4294901760
    %415 = vmatpush1.msra.mxu0 %v414
    %416 = vmatprep.subr.mxu0 0.0
    %v417 = vand.u32 %v219, 4294901760
    %v418 = vsub.f32 %v219, %v417
    %v419 = vand.u32 %v418, 4294901760
    %v420 = vsub.f32 %v418, %v419
    %v421 = vand.u32 %v420, 4294901760
    %422 = vmatpush1.msra.mxu0 %v421
    %423 = vmatprep.subr.mxu0 0.0
    %424 = vmatpush1.msra.mxu0 0.0
    %425 = vmatprep.subr.mxu0 0.0
    %426 = vmatpush1.msra.mxu0 0.0
    %427 = vmatprep.subr.mxu0 0.0
    %428 = vmatpush1.msra.mxu0 0.0
    %429 = vmatprep.subr.mxu0 0.0
    %430 = vmatpush1.msra.mxu0 0.0
    %431 = vmatprep.subr.mxu0 0.0
    %432 = vmatpush1.msra.mxu0 0.0
    %433 = vmatprep.subr.mxu0 0.0
    %434 = vmatpush1.msra.mxu0 0.0
    %435 = vmatprep.subr.mxu0 0.0
    %436 = vmatpush1.msra.mxu0 0.0
    %437 = vmatprep.subr.mxu0 0.0
    %438 = vmatpush1.msra.mxu0 0.0
    %439 = vmatprep.subr.mxu0 0.0
    %440 = vmatpush1.msra.mxu0 0.0
    %441 = vmatprep.subr.mxu0 0.0
    %442 = vmatpush1.msra.mxu0 0.0
    %443 = vmatprep.subr.mxu0 0.0
    %444 = vmatpush1.msra.mxu0 0.0
    %445 = vmatprep.subr.mxu0 0.0
    %446 = vmatpush1.msra.mxu0 0.0
    %447 = vmatprep.subr.mxu0 0.0
    %448 = vmatpush1.msra.mxu0 0.0
    %449 = vmatprep.subr.mxu0 0.0
    %450 = vmatpush1.msra.mxu0 0.0
    %451 = vmatprep.subr.mxu0 0.0
    %452 = vmatpush1.msra.mxu0 0.0
    %453 = vmatprep.subr.mxu0 0.0
    %454 = vmatpush1.msra.mxu0 0.0
    %455 = vmatprep.mubr.f32.mxu0 0.0
    %v456 = vand.u32 %v197, 4294901760
    %457 = vmatmul.mubr.f32.gmra.mrb[0].mxu0 %v456
    %v458 = vpop.f32.mrb[0].mxu0
    %v459 = vadd.f32 %v308, %v458
    %v460 = vpop.f32.mrb[0].mxu0
    %461 = vdwg.mxu0
    %462 = vmatprep.subr.mxu0 0.0
    %v463 = vand.u32 %v204, 4294901760
    %v464 = vsub.f32 %v204, %v463
    %465 = vmatpush1.msra.mxu0 %v464
    %466 = vmatprep.subr.mxu0 0.0
    %v467 = vand.u32 %v205, 4294901760
    %v468 = vsub.f32 %v205, %v467
    %469 = vmatpush1.msra.mxu0 %v468
    %470 = vmatprep.subr.mxu0 0.0
    %v471 = vand.u32 %v206, 4294901760
    %v472 = vsub.f32 %v206, %v471
    %473 = vmatpush1.msra.mxu0 %v472
    %474 = vmatprep.subr.mxu0 0.0
    %v475 = vand.u32 %v207, 4294901760
    %v476 = vsub.f32 %v207, %v475
    %477 = vmatpush1.msra.mxu0 %v476
    %478 = vmatprep.subr.mxu0 0.0
    %v479 = vand.u32 %v208, 4294901760
    %v480 = vsub.f32 %v208, %v479
    %481 = vmatpush1.msra.mxu0 %v480
    %482 = vmatprep.subr.mxu0 0.0
    %v483 = vand.u32 %v209, 4294901760
    %v484 = vsub.f32 %v209, %v483
    %485 = vmatpush1.msra.mxu0 %v484
    %486 = vmatprep.subr.mxu0 0.0
    %v487 = vand.u32 %v210, 4294901760
    %v488 = vsub.f32 %v210, %v487
    %489 = vmatpush1.msra.mxu0 %v488
    %490 = vmatprep.subr.mxu0 0.0
    %v491 = vand.u32 %v211, 4294901760
    %v492 = vsub.f32 %v211, %v491
    %493 = vmatpush1.msra.mxu0 %v492
    %494 = vmatprep.subr.mxu0 0.0
    %v495 = vand.u32 %v212, 4294901760
    %v496 = vsub.f32 %v212, %v495
    %497 = vmatpush1.msra.mxu0 %v496
    %498 = vmatprep.subr.mxu0 0.0
    %v499 = vand.u32 %v213, 4294901760
    %v500 = vsub.f32 %v213, %v499
    %501 = vmatpush1.msra.mxu0 %v500
    %502 = vmatprep.subr.mxu0 0.0
    %v503 = vand.u32 %v214, 4294901760
    %v504 = vsub.f32 %v214, %v503
    %505 = vmatpush1.msra.mxu0 %v504
    %506 = vmatprep.subr.mxu0 0.0
    %v507 = vand.u32 %v215, 4294901760
    %v508 = vsub.f32 %v215, %v507
    %509 = vmatpush1.msra.mxu0 %v508
    %510 = vmatprep.subr.mxu0 0.0
    %v511 = vand.u32 %v216, 4294901760
    %v512 = vsub.f32 %v216, %v511
    %513 = vmatpush1.msra.mxu0 %v512
    %514 = vmatprep.subr.mxu0 0.0
    %v515 = vand.u32 %v217, 4294901760
    %v516 = vsub.f32 %v217, %v515
    %517 = vmatpush1.msra.mxu0 %v516
    %518 = vmatprep.subr.mxu0 0.0
    %v519 = vand.u32 %v218, 4294901760
    %v520 = vsub.f32 %v218, %v519
    %521 = vmatpush1.msra.mxu0 %v520
    %522 = vmatprep.subr.mxu0 0.0
    %v523 = vand.u32 %v219, 4294901760
    %v524 = vsub.f32 %v219, %v523
    %525 = vmatpush1.msra.mxu0 %v524
    %526 = vmatprep.subr.mxu0 0.0
    %527 = vmatpush1.msra.mxu0 0.0
    %528 = vmatprep.subr.mxu0 0.0
    %529 = vmatpush1.msra.mxu0 0.0
    %530 = vmatprep.subr.mxu0 0.0
    %531 = vmatpush1.msra.mxu0 0.0
    %532 = vmatprep.subr.mxu0 0.0
    %533 = vmatpush1.msra.mxu0 0.0
    %534 = vmatprep.subr.mxu0 0.0
    %535 = vmatpush1.msra.mxu0 0.0
    %536 = vmatprep.subr.mxu0 0.0
    %537 = vmatpush1.msra.mxu0 0.0
    %538 = vmatprep.subr.mxu0 0.0
    %539 = vmatpush1.msra.mxu0 0.0
    %540 = vmatprep.subr.mxu0 0.0
    %541 = vmatpush1.msra.mxu0 0.0
    %542 = vmatprep.subr.mxu0 0.0
    %543 = vmatpush1.msra.mxu0 0.0
    %544 = vmatprep.subr.mxu0 0.0
    %545 = vmatpush1.msra.mxu0 0.0
    %546 = vmatprep.subr.mxu0 0.0
    %547 = vmatpush1.msra.mxu0 0.0
    %548 = vmatprep.subr.mxu0 0.0
    %549 = vmatpush1.msra.mxu0 0.0
    %550 = vmatprep.subr.mxu0 0.0
    %551 = vmatpush1.msra.mxu0 0.0
    %552 = vmatprep.subr.mxu0 0.0
    %553 = vmatpush1.msra.mxu0 0.0
    %554 = vmatprep.subr.mxu0 0.0
    %555 = vmatpush1.msra.mxu0 0.0
    %556 = vmatprep.subr.mxu0 0.0
    %557 = vmatpush1.msra.mxu0 0.0
    %558 = vmatprep.mubr.f32.mxu0 0.0
    %v559 = vand.u32 %v197, 4294901760
    %v560 = vsub.f32 %v197, %v559
    %561 = vmatmul.mubr.f32.gmra.mrb[0].mxu0 %v560
    %v562 = vpop.f32.mrb[0].mxu0
    %v563 = vadd.f32 %v459, %v562
    %v564 = vpop.f32.mrb[0].mxu0
    %565 = vdwg.mxu0
    %566 = vmatprep.subr.mxu0 0.0
    %v567 = vand.u32 %v204, 4294901760
    %568 = vmatpush1.msra.mxu0 %v567
    %569 = vmatprep.subr.mxu0 0.0
    %v570 = vand.u32 %v205, 4294901760
    %571 = vmatpush1.msra.mxu0 %v570
    %572 = vmatprep.subr.mxu0 0.0
    %v573 = vand.u32 %v206, 4294901760
    %574 = vmatpush1.msra.mxu0 %v573
    %575 = vmatprep.subr.mxu0 0.0
    %v576 = vand.u32 %v207, 4294901760
    %577 = vmatpush1.msra.mxu0 %v576
    %578 = vmatprep.subr.mxu0 0.0
    %v579 = vand.u32 %v208, 4294901760
    %580 = vmatpush1.msra.mxu0 %v579
    %581 = vmatprep.subr.mxu0 0.0
    %v582 = vand.u32 %v209, 4294901760
    %583 = vmatpush1.msra.mxu0 %v582
    %584 = vmatprep.subr.mxu0 0.0
    %v585 = vand.u32 %v210, 4294901760
    %586 = vmatpush1.msra.mxu0 %v585
    %587 = vmatprep.subr.mxu0 0.0
    %v588 = vand.u32 %v211, 4294901760
    %589 = vmatpush1.msra.mxu0 %v588
    %590 = vmatprep.subr.mxu0 0.0
    %v591 = vand.u32 %v212, 4294901760
    %592 = vmatpush1.msra.mxu0 %v591
    %593 = vmatprep.subr.mxu0 0.0
    %v594 = vand.u32 %v213, 4294901760
    %595 = vmatpush1.msra.mxu0 %v594
    %596 = vmatprep.subr.mxu0 0.0
    %v597 = vand.u32 %v214, 4294901760
    %598 = vmatpush1.msra.mxu0 %v597
    %599 = vmatprep.subr.mxu0 0.0
    %v600 = vand.u32 %v215, 4294901760
    %601 = vmatpush1.msra.mxu0 %v600
    %602 = vmatprep.subr.mxu0 0.0
    %v603 = vand.u32 %v216, 4294901760
    %604 = vmatpush1.msra.mxu0 %v603
    %605 = vmatprep.subr.mxu0 0.0
    %v606 = vand.u32 %v217, 4294901760
    %607 = vmatpush1.msra.mxu0 %v606
    %608 = vmatprep.subr.mxu0 0.0
    %v609 = vand.u32 %v218, 4294901760
    %610 = vmatpush1.msra.mxu0 %v609
    %611 = vmatprep.subr.mxu0 0.0
    %v612 = vand.u32 %v219, 4294901760
    %613 = vmatpush1.msra.mxu0 %v612
    %614 = vmatprep.subr.mxu0 0.0
    %615 = vmatpush1.msra.mxu0 0.0
    %616 = vmatprep.subr.mxu0 0.0
    %617 = vmatpush1.msra.mxu0 0.0
    %618 = vmatprep.subr.mxu0 0.0
    %619 = vmatpush1.msra.mxu0 0.0
    %620 = vmatprep.subr.mxu0 0.0
    %621 = vmatpush1.msra.mxu0 0.0
    %622 = vmatprep.subr.mxu0 0.0
    %623 = vmatpush1.msra.mxu0 0.0
    %624 = vmatprep.subr.mxu0 0.0
    %625 = vmatpush1.msra.mxu0 0.0
    %626 = vmatprep.subr.mxu0 0.0
    %627 = vmatpush1.msra.mxu0 0.0
    %628 = vmatprep.subr.mxu0 0.0
    %629 = vmatpush1.msra.mxu0 0.0
    %630 = vmatprep.subr.mxu0 0.0
    %631 = vmatpush1.msra.mxu0 0.0
    %632 = vmatprep.subr.mxu0 0.0
    %633 = vmatpush1.msra.mxu0 0.0
    %634 = vmatprep.subr.mxu0 0.0
    %635 = vmatpush1.msra.mxu0 0.0
    %636 = vmatprep.subr.mxu0 0.0
    %637 = vmatpush1.msra.mxu0 0.0
    %638 = vmatprep.subr.mxu0 0.0
    %639 = vmatpush1.msra.mxu0 0.0
    %640 = vmatprep.subr.mxu0 0.0
    %641 = vmatpush1.msra.mxu0 0.0
    %642 = vmatprep.subr.mxu0 0.0
    %643 = vmatpush1.msra.mxu0 0.0
    %644 = vmatprep.subr.mxu0 0.0
    %645 = vmatpush1.msra.mxu0 0.0
    %646 = vmatprep.mubr.f32.mxu0 0.0
    %v647 = vand.u32 %v197, 4294901760
    %v648 = vsub.f32 %v197, %v647
    %v649 = vand.u32 %v648, 4294901760
    %650 = vmatmul.mubr.f32.gmra.mrb[0].mxu0 %v649
    %v651 = vpop.f32.mrb[0].mxu0
    %v652 = vadd.f32 %v563, %v651
    %v653 = vpop.f32.mrb[0].mxu0
    %654 = vdwg.mxu0
    %655 = vmatprep.subr.mxu0 0.0
    %v656 = vand.u32 %v204, 4294901760
    %v657 = vsub.f32 %v204, %v656
    %v658 = vand.u32 %v657, 4294901760
    %659 = vmatpush1.msra.mxu0 %v658
    %660 = vmatprep.subr.mxu0 0.0
    %v661 = vand.u32 %v205, 4294901760
    %v662 = vsub.f32 %v205, %v661
    %v663 = vand.u32 %v662, 4294901760
    %664 = vmatpush1.msra.mxu0 %v663
    %665 = vmatprep.subr.mxu0 0.0
    %v666 = vand.u32 %v206, 4294901760
    %v667 = vsub.f32 %v206, %v666
    %v668 = vand.u32 %v667, 4294901760
    %669 = vmatpush1.msra.mxu0 %v668
    %670 = vmatprep.subr.mxu0 0.0
    %v671 = vand.u32 %v207, 4294901760
    %v672 = vsub.f32 %v207, %v671
    %v673 = vand.u32 %v672, 4294901760
    %674 = vmatpush1.msra.mxu0 %v673
    %675 = vmatprep.subr.mxu0 0.0
    %v676 = vand.u32 %v208, 4294901760
    %v677 = vsub.f32 %v208, %v676
    %v678 = vand.u32 %v677, 4294901760
    %679 = vmatpush1.msra.mxu0 %v678
    %680 = vmatprep.subr.mxu0 0.0
    %v681 = vand.u32 %v209, 4294901760
    %v682 = vsub.f32 %v209, %v681
    %v683 = vand.u32 %v682, 4294901760
    %684 = vmatpush1.msra.mxu0 %v683
    %685 = vmatprep.subr.mxu0 0.0
    %v686 = vand.u32 %v210, 4294901760
    %v687 = vsub.f32 %v210, %v686
    %v688 = vand.u32 %v687, 4294901760
    %689 = vmatpush1.msra.mxu0 %v688
    %690 = vmatprep.subr.mxu0 0.0
    %v691 = vand.u32 %v211, 4294901760
    %v692 = vsub.f32 %v211, %v691
    %v693 = vand.u32 %v692, 4294901760
    %694 = vmatpush1.msra.mxu0 %v693
    %695 = vmatprep.subr.mxu0 0.0
    %v696 = vand.u32 %v212, 4294901760
    %v697 = vsub.f32 %v212, %v696
    %v698 = vand.u32 %v697, 4294901760
    %699 = vmatpush1.msra.mxu0 %v698
    %700 = vmatprep.subr.mxu0 0.0
    %v701 = vand.u32 %v213, 4294901760
    %v702 = vsub.f32 %v213, %v701
    %v703 = vand.u32 %v702, 4294901760
    %704 = vmatpush1.msra.mxu0 %v703
    %705 = vmatprep.subr.mxu0 0.0
    %v706 = vand.u32 %v214, 4294901760
    %v707 = vsub.f32 %v214, %v706
    %v708 = vand.u32 %v707, 4294901760
    %709 = vmatpush1.msra.mxu0 %v708
    %710 = vmatprep.subr.mxu0 0.0
    %v711 = vand.u32 %v215, 4294901760
    %v712 = vsub.f32 %v215, %v711
    %v713 = vand.u32 %v712, 4294901760
    %714 = vmatpush1.msra.mxu0 %v713
    %715 = vmatprep.subr.mxu0 0.0
    %v716 = vand.u32 %v216, 4294901760
    %v717 = vsub.f32 %v216, %v716
    %v718 = vand.u32 %v717, 4294901760
    %719 = vmatpush1.msra.mxu0 %v718
    %720 = vmatprep.subr.mxu0 0.0
    %v721 = vand.u32 %v217, 4294901760
    %v722 = vsub.f32 %v217, %v721
    %v723 = vand.u32 %v722, 4294901760
    %724 = vmatpush1.msra.mxu0 %v723
    %725 = vmatprep.subr.mxu0 0.0
    %v726 = vand.u32 %v218, 4294901760
    %v727 = vsub.f32 %v218, %v726
    %v728 = vand.u32 %v727, 4294901760
    %729 = vmatpush1.msra.mxu0 %v728
    %730 = vmatprep.subr.mxu0 0.0
    %v731 = vand.u32 %v219, 4294901760
    %v732 = vsub.f32 %v219, %v731
    %v733 = vand.u32 %v732, 4294901760
    %734 = vmatpush1.msra.mxu0 %v733
    %735 = vmatprep.subr.mxu0 0.0
    %736 = vmatpush1.msra.mxu0 0.0
    %737 = vmatprep.subr.mxu0 0.0
    %738 = vmatpush1.msra.mxu0 0.0
    %739 = vmatprep.subr.mxu0 0.0
    %740 = vmatpush1.msra.mxu0 0.0
    %741 = vmatprep.subr.mxu0 0.0
    %742 = vmatpush1.msra.mxu0 0.0
    %743 = vmatprep.subr.mxu0 0.0
    %744 = vmatpush1.msra.mxu0 0.0
    %745 = vmatprep.subr.mxu0 0.0
    %746 = vmatpush1.msra.mxu0 0.0
    %747 = vmatprep.subr.mxu0 0.0
    %748 = vmatpush1.msra.mxu0 0.0
    %749 = vmatprep.subr.mxu0 0.0
    %750 = vmatpush1.msra.mxu0 0.0
    %751 = vmatprep.subr.mxu0 0.0
    %752 = vmatpush1.msra.mxu0 0.0
    %753 = vmatprep.subr.mxu0 0.0
    %754 = vmatpush1.msra.mxu0 0.0
    %755 = vmatprep.subr.mxu0 0.0
    %756 = vmatpush1.msra.mxu0 0.0
    %757 = vmatprep.subr.mxu0 0.0
    %758 = vmatpush1.msra.mxu0 0.0
    %759 = vmatprep.subr.mxu0 0.0
    %760 = vmatpush1.msra.mxu0 0.0
    %761 = vmatprep.subr.mxu0 0.0
    %762 = vmatpush1.msra.mxu0 0.0
    %763 = vmatprep.subr.mxu0 0.0
    %764 = vmatpush1.msra.mxu0 0.0
    %765 = vmatprep.subr.mxu0 0.0
    %766 = vmatpush1.msra.mxu0 0.0
    %767 = vmatprep.mubr.f32.mxu0 0.0
    %v768 = vand.u32 %v197, 4294901760
    %769 = vmatmul.mubr.f32.gmra.mrb[0].mxu0 %v768
    %v770 = vpop.f32.mrb[0].mxu0
    %v771 = vadd.f32 %v652, %v770
    %v772 = vpop.f32.mrb[0].mxu0
    %773 = vdwg.mxu0
    %774 = vmatprep.subr.mxu0 0.0
    %v775 = vand.u32 %v204, 4294901760
    %776 = vmatpush1.msra.mxu0 %v775
    %777 = vmatprep.subr.mxu0 0.0
    %v778 = vand.u32 %v205, 4294901760
    %779 = vmatpush1.msra.mxu0 %v778
    %780 = vmatprep.subr.mxu0 0.0
    %v781 = vand.u32 %v206, 4294901760
    %782 = vmatpush1.msra.mxu0 %v781
    %783 = vmatprep.subr.mxu0 0.0
    %v784 = vand.u32 %v207, 4294901760
    %785 = vmatpush1.msra.mxu0 %v784
    %786 = vmatprep.subr.mxu0 0.0
    %v787 = vand.u32 %v208, 4294901760
    %788 = vmatpush1.msra.mxu0 %v787
    %789 = vmatprep.subr.mxu0 0.0
    %v790 = vand.u32 %v209, 4294901760
    %791 = vmatpush1.msra.mxu0 %v790
    %792 = vmatprep.subr.mxu0 0.0
    %v793 = vand.u32 %v210, 4294901760
    %794 = vmatpush1.msra.mxu0 %v793
    %795 = vmatprep.subr.mxu0 0.0
    %v796 = vand.u32 %v211, 4294901760
    %797 = vmatpush1.msra.mxu0 %v796
    %798 = vmatprep.subr.mxu0 0.0
    %v799 = vand.u32 %v212, 4294901760
    %800 = vmatpush1.msra.mxu0 %v799
    %801 = vmatprep.subr.mxu0 0.0
    %v802 = vand.u32 %v213, 4294901760
    %803 = vmatpush1.msra.mxu0 %v802
    %804 = vmatprep.subr.mxu0 0.0
    %v805 = vand.u32 %v214, 4294901760
    %806 = vmatpush1.msra.mxu0 %v805
    %807 = vmatprep.subr.mxu0 0.0
    %v808 = vand.u32 %v215, 4294901760
    %809 = vmatpush1.msra.mxu0 %v808
    %810 = vmatprep.subr.mxu0 0.0
    %v811 = vand.u32 %v216, 4294901760
    %812 = vmatpush1.msra.mxu0 %v811
    %813 = vmatprep.subr.mxu0 0.0
    %v814 = vand.u32 %v217, 4294901760
    %815 = vmatpush1.msra.mxu0 %v814
    %816 = vmatprep.subr.mxu0 0.0
    %v817 = vand.u32 %v218, 4294901760
    %818 = vmatpush1.msra.mxu0 %v817
    %819 = vmatprep.subr.mxu0 0.0
    %v820 = vand.u32 %v219, 4294901760
    %821 = vmatpush1.msra.mxu0 %v820
    %822 = vmatprep.subr.mxu0 0.0
    %823 = vmatpush1.msra.mxu0 0.0
    %824 = vmatprep.subr.mxu0 0.0
    %825 = vmatpush1.msra.mxu0 0.0
    %826 = vmatprep.subr.mxu0 0.0
    %827 = vmatpush1.msra.mxu0 0.0
    %828 = vmatprep.subr.mxu0 0.0
    %829 = vmatpush1.msra.mxu0 0.0
    %830 = vmatprep.subr.mxu0 0.0
    %831 = vmatpush1.msra.mxu0 0.0
    %832 = vmatprep.subr.mxu0 0.0
    %833 = vmatpush1.msra.mxu0 0.0
    %834 = vmatprep.subr.mxu0 0.0
    %835 = vmatpush1.msra.mxu0 0.0
    %836 = vmatprep.subr.mxu0 0.0
    %837 = vmatpush1.msra.mxu0 0.0
    %838 = vmatprep.subr.mxu0 0.0
    %839 = vmatpush1.msra.mxu0 0.0
    %840 = vmatprep.subr.mxu0 0.0
    %841 = vmatpush1.msra.mxu0 0.0
    %842 = vmatprep.subr.mxu0 0.0
    %843 = vmatpush1.msra.mxu0 0.0
    %844 = vmatprep.subr.mxu0 0.0
    %845 = vmatpush1.msra.mxu0 0.0
    %846 = vmatprep.subr.mxu0 0.0
    %847 = vmatpush1.msra.mxu0 0.0
    %848 = vmatprep.subr.mxu0 0.0
    %849 = vmatpush1.msra.mxu0 0.0
    %850 = vmatprep.subr.mxu0 0.0
    %851 = vmatpush1.msra.mxu0 0.0
    %852 = vmatprep.subr.mxu0 0.0
    %853 = vmatpush1.msra.mxu0 0.0
    %854 = vmatprep.mubr.f32.mxu0 0.0
    %v855 = vand.u32 %v197, 4294901760
    %856 = vmatmul.mubr.f32.gmra.mrb[0].mxu0 %v855
    %v857 = vpop.f32.mrb[0].mxu0
    %v858 = vadd.f32 %v771, %v857
    %v859 = vpop.f32.mrb[0].mxu0
    %860 = vdwg.mxu0
    %v861 = vld [vmem:[#allocation8] sm:$0xff]
    %v862 = vld [vmem:[#allocation8 + $0x8] sm:$0xff]
    %v863 = vld [vmem:[#allocation8 + $0x10] sm:$0xff]
    %v864 = vld [vmem:[#allocation8 + $0x18] sm:$0xff]
    %v865 = vld [vmem:[#allocation8 + $0x20] sm:$0xff]
    %v866 = vld [vmem:[#allocation8 + $0x28] sm:$0xff]
    %v867 = vld [vmem:[#allocation8 + $0x30] sm:$0xff]
    %v868 = vld [vmem:[#allocation8 + $0x38] sm:$0xff]
    %v869 = vld [vmem:[#allocation8 + $0x40] sm:$0xff]
    %v870 = vld [vmem:[#allocation8 + $0x48] sm:$0xff]
    %v871 = vld [vmem:[#allocation8 + $0x50] sm:$0xff]
    %v872 = vld [vmem:[#allocation8 + $0x58] sm:$0xff]
    %v873 = vld [vmem:[#allocation8 + $0x60] sm:$0xff]
    %v874 = vld [vmem:[#allocation8 + $0x68] sm:$0xff]
    %v875 = vld [vmem:[#allocation8 + $0x70] sm:$0xff]
    %v876 = vld [vmem:[#allocation8 + $0x78] sm:$0xff]
    %877 = vmatprep.subr.mxu0 0.0
    %v878 = vand.u32 %v861, 4294901760
    %879 = vmatpush1.msra.mxu0 %v878
    %880 = vmatprep.subr.mxu0 0.0
    %v881 = vand.u32 %v862, 4294901760
    %882 = vmatpush1.msra.mxu0 %v881
    %883 = vmatprep.subr.mxu0 0.0
    %v884 = vand.u32 %v863, 4294901760
    %885 = vmatpush1.msra.mxu0 %v884
    %886 = vmatprep.subr.mxu0 0.0
    %v887 = vand.u32 %v864, 4294901760
    %888 = vmatpush1.msra.mxu0 %v887
    %889 = vmatprep.subr.mxu0 0.0
    %v890 = vand.u32 %v865, 4294901760
    %891 = vmatpush1.msra.mxu0 %v890
    %892 = vmatprep.subr.mxu0 0.0
    %v893 = vand.u32 %v866, 4294901760
    %894 = vmatpush1.msra.mxu0 %v893
    %895 = vmatprep.subr.mxu0 0.0
    %v896 = vand.u32 %v867, 4294901760
    %897 = vmatpush1.msra.mxu0 %v896
    %898 = vmatprep.subr.mxu0 0.0
    %v899 = vand.u32 %v868, 4294901760
    %900 = vmatpush1.msra.mxu0 %v899
    %901 = vmatprep.subr.mxu0 0.0
    %v902 = vand.u32 %v869, 4294901760
    %903 = vmatpush1.msra.mxu0 %v902
    %904 = vmatprep.subr.mxu0 0.0
    %v905 = vand.u32 %v870, 4294901760
    %906 = vmatpush1.msra.mxu0 %v905
    %907 = vmatprep.subr.mxu0 0.0
    %v908 = vand.u32 %v871, 4294901760
    %909 = vmatpush1.msra.mxu0 %v908
    %910 = vmatprep.subr.mxu0 0.0
    %v911 = vand.u32 %v872, 4294901760
    %912 = vmatpush1.msra.mxu0 %v911
    %913 = vmatprep.subr.mxu0 0.0
    %v914 = vand.u32 %v873, 4294901760
    %915 = vmatpush1.msra.mxu0 %v914
    %916 = vmatprep.subr.mxu0 0.0
    %v917 = vand.u32 %v874, 4294901760
    %918 = vmatpush1.msra.mxu0 %v917
    %919 = vmatprep.subr.mxu0 0.0
    %v920 = vand.u32 %v875, 4294901760
    %921 = vmatpush1.msra.mxu0 %v920
    %922 = vmatprep.subr.mxu0 0.0
    %v923 = vand.u32 %v876, 4294901760
    %924 = vmatpush1.msra.mxu0 %v923
    %925 = vmatprep.subr.mxu0 0.0
    %926 = vmatpush1.msra.mxu0 0.0
    %927 = vmatprep.subr.mxu0 0.0
    %928 = vmatpush1.msra.mxu0 0.0
    %929 = vmatprep.subr.mxu0 0.0
    %930 = vmatpush1.msra.mxu0 0.0
    %931 = vmatprep.subr.mxu0 0.0
    %932 = vmatpush1.msra.mxu0 0.0
    %933 = vmatprep.subr.mxu0 0.0
    %934 = vmatpush1.msra.mxu0 0.0
    %935 = vmatprep.subr.mxu0 0.0
    %936 = vmatpush1.msra.mxu0 0.0
    %937 = vmatprep.subr.mxu0 0.0
    %938 = vmatpush1.msra.mxu0 0.0
    %939 = vmatprep.subr.mxu0 0.0
    %940 = vmatpush1.msra.mxu0 0.0
    %941 = vmatprep.subr.mxu0 0.0
    %942 = vmatpush1.msra.mxu0 0.0
    %943 = vmatprep.subr.mxu0 0.0
    %944 = vmatpush1.msra.mxu0 0.0
    %945 = vmatprep.subr.mxu0 0.0
    %946 = vmatpush1.msra.mxu0 0.0
    %947 = vmatprep.subr.mxu0 0.0
    %948 = vmatpush1.msra.mxu0 0.0
    %949 = vmatprep.subr.mxu0 0.0
    %950 = vmatpush1.msra.mxu0 0.0
    %951 = vmatprep.subr.mxu0 0.0
    %952 = vmatpush1.msra.mxu0 0.0
    %953 = vmatprep.subr.mxu0 0.0
    %954 = vmatpush1.msra.mxu0 0.0
    %955 = vmatprep.subr.mxu0 0.0
    %956 = vmatpush1.msra.mxu0 0.0
    %957 = vmatprep.mubr.f32.mxu0 0.0
    %v958 = vand.u32 %v203, 4294901760
    %v959 = vsub.f32 %v203, %v958
    %v960 = vand.u32 %v959, 4294901760
    %v961 = vsub.f32 %v959, %v960
    %v962 = vand.u32 %v961, 4294901760
    %963 = vmatmul.mubr.f32.gmra.mrb[0].mxu0 %v962
    %v964 = vpop.f32.mrb[0].mxu0
    %v965 = vadd.f32 0.0, %v964
    %v966 = vpop.f32.mrb[0].mxu0
    %967 = vdwg.mxu0
    %968 = vmatprep.subr.mxu0 0.0
    %v969 = vand.u32 %v861, 4294901760
    %v970 = vsub.f32 %v861, %v969
    %v971 = vand.u32 %v970, 4294901760
    %v972 = vsub.f32 %v970, %v971
    %v973 = vand.u32 %v972, 4294901760
    %974 = vmatpush1.msra.mxu0 %v973
    %975 = vmatprep.subr.mxu0 0.0
    %v976 = vand.u32 %v862, 4294901760
    %v977 = vsub.f32 %v862, %v976
    %v978 = vand.u32 %v977, 4294901760
    %v979 = vsub.f32 %v977, %v978
    %v980 = vand.u32 %v979, 4294901760
    %981 = vmatpush1.msra.mxu0 %v980
    %982 = vmatprep.subr.mxu0 0.0
    %v983 = vand.u32 %v863, 4294901760
    %v984 = vsub.f32 %v863, %v983
    %v985 = vand.u32 %v984, 4294901760
    %v986 = vsub.f32 %v984, %v985
    %v987 = vand.u32 %v986, 4294901760
    %988 = vmatpush1.msra.mxu0 %v987
    %989 = vmatprep.subr.mxu0 0.0
    %v990 = vand.u32 %v864, 4294901760
    %v991 = vsub.f32 %v864, %v990
    %v992 = vand.u32 %v991, 4294901760
    %v993 = vsub.f32 %v991, %v992
    %v994 = vand.u32 %v993, 4294901760
    %995 = vmatpush1.msra.mxu0 %v994
    %996 = vmatprep.subr.mxu0 0.0
    %v997 = vand.u32 %v865, 4294901760
    %v998 = vsub.f32 %v865, %v997
    %v999 = vand.u32 %v998, 4294901760
    %v1000 = vsub.f32 %v998, %v999
    %v1001 = vand.u32 %v1000, 4294901760
    %1002 = vmatpush1.msra.mxu0 %v1001
    %1003 = vmatprep.subr.mxu0 0.0
    %v1004 = vand.u32 %v866, 4294901760
    %v1005 = vsub.f32 %v866, %v1004
    %v1006 = vand.u32 %v1005, 4294901760
    %v1007 = vsub.f32 %v1005, %v1006
    %v1008 = vand.u32 %v1007, 4294901760
    %1009 = vmatpush1.msra.mxu0 %v1008
    %1010 = vmatprep.subr.mxu0 0.0
    %v1011 = vand.u32 %v867, 4294901760
    %v1012 = vsub.f32 %v867, %v1011
    %v1013 = vand.u32 %v1012, 4294901760
    %v1014 = vsub.f32 %v1012, %v1013
    %v1015 = vand.u32 %v1014, 4294901760
    %1016 = vmatpush1.msra.mxu0 %v1015
    %1017 = vmatprep.subr.mxu0 0.0
    %v1018 = vand.u32 %v868, 4294901760
    %v1019 = vsub.f32 %v868, %v1018
    %v1020 = vand.u32 %v1019, 4294901760
    %v1021 = vsub.f32 %v1019, %v1020
    %v1022 = vand.u32 %v1021, 4294901760
    %1023 = vmatpush1.msra.mxu0 %v1022
    %1024 = vmatprep.subr.mxu0 0.0
    %v1025 = vand.u32 %v869, 4294901760
    %v1026 = vsub.f32 %v869, %v1025
    %v1027 = vand.u32 %v1026, 4294901760
    %v1028 = vsub.f32 %v1026, %v1027
    %v1029 = vand.u32 %v1028, 4294901760
    %1030 = vmatpush1.msra.mxu0 %v1029
    %1031 = vmatprep.subr.mxu0 0.0
    %v1032 = vand.u32 %v870, 4294901760
    %v1033 = vsub.f32 %v870, %v1032
    %v1034 = vand.u32 %v1033, 4294901760
    %v1035 = vsub.f32 %v1033, %v1034
    %v1036 = vand.u32 %v1035, 4294901760
    %1037 = vmatpush1.msra.mxu0 %v1036
    %1038 = vmatprep.subr.mxu0 0.0
    %v1039 = vand.u32 %v871, 4294901760
    %v1040 = vsub.f32 %v871, %v1039
    %v1041 = vand.u32 %v1040, 4294901760
    %v1042 = vsub.f32 %v1040, %v1041
    %v1043 = vand.u32 %v1042, 4294901760
    %1044 = vmatpush1.msra.mxu0 %v1043
    %1045 = vmatprep.subr.mxu0 0.0
    %v1046 = vand.u32 %v872, 4294901760
    %v1047 = vsub.f32 %v872, %v1046
    %v1048 = vand.u32 %v1047, 4294901760
    %v1049 = vsub.f32 %v1047, %v1048
    %v1050 = vand.u32 %v1049, 4294901760
    %1051 = vmatpush1.msra.mxu0 %v1050
    %1052 = vmatprep.subr.mxu0 0.0
    %v1053 = vand.u32 %v873, 4294901760
    %v1054 = vsub.f32 %v873, %v1053
    %v1055 = vand.u32 %v1054, 4294901760
    %v1056 = vsub.f32 %v1054, %v1055
    %v1057 = vand.u32 %v1056, 4294901760
    %1058 = vmatpush1.msra.mxu0 %v1057
    %1059 = vmatprep.subr.mxu0 0.0
    %v1060 = vand.u32 %v874, 4294901760
    %v1061 = vsub.f32 %v874, %v1060
    %v1062 = vand.u32 %v1061, 4294901760
    %v1063 = vsub.f32 %v1061, %v1062
    %v1064 = vand.u32 %v1063, 4294901760
    %1065 = vmatpush1.msra.mxu0 %v1064
    %1066 = vmatprep.subr.mxu0 0.0
    %v1067 = vand.u32 %v875, 4294901760
    %v1068 = vsub.f32 %v875, %v1067
    %v1069 = vand.u32 %v1068, 4294901760
    %v1070 = vsub.f32 %v1068, %v1069
    %v1071 = vand.u32 %v1070, 4294901760
    %1072 = vmatpush1.msra.mxu0 %v1071
    %1073 = vmatprep.subr.mxu0 0.0
    %v1074 = vand.u32 %v876, 4294901760
    %v1075 = vsub.f32 %v876, %v1074
    %v1076 = vand.u32 %v1075, 4294901760
    %v1077 = vsub.f32 %v1075, %v1076
    %v1078 = vand.u32 %v1077, 4294901760
    %1079 = vmatpush1.msra.mxu0 %v1078
    %1080 = vmatprep.subr.mxu0 0.0
    %1081 = vmatpush1.msra.mxu0 0.0
    %1082 = vmatprep.subr.mxu0 0.0
    %1083 = vmatpush1.msra.mxu0 0.0
    %1084 = vmatprep.subr.mxu0 0.0
    %1085 = vmatpush1.msra.mxu0 0.0
    %1086 = vmatprep.subr.mxu0 0.0
    %1087 = vmatpush1.msra.mxu0 0.0
    %1088 = vmatprep.subr.mxu0 0.0
    %1089 = vmatpush1.msra.mxu0 0.0
    %1090 = vmatprep.subr.mxu0 0.0
    %1091 = vmatpush1.msra.mxu0 0.0
    %1092 = vmatprep.subr.mxu0 0.0
    %1093 = vmatpush1.msra.mxu0 0.0
    %1094 = vmatprep.subr.mxu0 0.0
    %1095 = vmatpush1.msra.mxu0 0.0
    %1096 = vmatprep.subr.mxu0 0.0
    %1097 = vmatpush1.msra.mxu0 0.0
    %1098 = vmatprep.subr.mxu0 0.0
    %1099 = vmatpush1.msra.mxu0 0.0
    %1100 = vmatprep.subr.mxu0 0.0
    %1101 = vmatpush1.msra.mxu0 0.0
    %1102 = vmatprep.subr.mxu0 0.0
    %1103 = vmatpush1.msra.mxu0 0.0
    %1104 = vmatprep.subr.mxu0 0.0
    %1105 = vmatpush1.msra.mxu0 0.0
    %1106 = vmatprep.subr.mxu0 0.0
    %1107 = vmatpush1.msra.mxu0 0.0
    %1108 = vmatprep.subr.mxu0 0.0
    %1109 = vmatpush1.msra.mxu0 0.0
    %1110 = vmatprep.subr.mxu0 0.0
    %1111 = vmatpush1.msra.mxu0 0.0
    %1112 = vmatprep.mubr.f32.mxu0 0.0
    %v1113 = vand.u32 %v203, 4294901760
    %1114 = vmatmul.mubr.f32.gmra.mrb[0].mxu0 %v1113
    %v1115 = vpop.f32.mrb[0].mxu0
    %v1116 = vadd.f32 %v965, %v1115
    %v1117 = vpop.f32.mrb[0].mxu0
    %1118 = vdwg.mxu0
    %1119 = vmatprep.subr.mxu0 0.0
    %v1120 = vand.u32 %v861, 4294901760
    %v1121 = vsub.f32 %v861, %v1120
    %1122 = vmatpush1.msra.mxu0 %v1121
    %1123 = vmatprep.subr.mxu0 0.0
    %v1124 = vand.u32 %v862, 4294901760
    %v1125 = vsub.f32 %v862, %v1124
    %1126 = vmatpush1.msra.mxu0 %v1125
    %1127 = vmatprep.subr.mxu0 0.0
    %v1128 = vand.u32 %v863, 4294901760
    %v1129 = vsub.f32 %v863, %v1128
    %1130 = vmatpush1.msra.mxu0 %v1129
    %1131 = vmatprep.subr.mxu0 0.0
    %v1132 = vand.u32 %v864, 4294901760
    %v1133 = vsub.f32 %v864, %v1132
    %1134 = vmatpush1.msra.mxu0 %v1133
    %1135 = vmatprep.subr.mxu0 0.0
    %v1136 = vand.u32 %v865, 4294901760
    %v1137 = vsub.f32 %v865, %v1136
    %1138 = vmatpush1.msra.mxu0 %v1137
    %1139 = vmatprep.subr.mxu0 0.0
    %v1140 = vand.u32 %v866, 4294901760
    %v1141 = vsub.f32 %v866, %v1140
    %1142 = vmatpush1.msra.mxu0 %v1141
    %1143 = vmatprep.subr.mxu0 0.0
    %v1144 = vand.u32 %v867, 4294901760
    %v1145 = vsub.f32 %v867, %v1144
    %1146 = vmatpush1.msra.mxu0 %v1145
    %1147 = vmatprep.subr.mxu0 0.0
    %v1148 = vand.u32 %v868, 4294901760
    %v1149 = vsub.f32 %v868, %v1148
    %1150 = vmatpush1.msra.mxu0 %v1149
    %1151 = vmatprep.subr.mxu0 0.0
    %v1152 = vand.u32 %v869, 4294901760
    %v1153 = vsub.f32 %v869, %v1152
    %1154 = vmatpush1.msra.mxu0 %v1153
    %1155 = vmatprep.subr.mxu0 0.0
    %v1156 = vand.u32 %v870, 4294901760
    %v1157 = vsub.f32 %v870, %v1156
    %1158 = vmatpush1.msra.mxu0 %v1157
    %1159 = vmatprep.subr.mxu0 0.0
    %v1160 = vand.u32 %v871, 4294901760
    %v1161 = vsub.f32 %v871, %v1160
    %1162 = vmatpush1.msra.mxu0 %v1161
    %1163 = vmatprep.subr.mxu0 0.0
    %v1164 = vand.u32 %v872, 4294901760
    %v1165 = vsub.f32 %v872, %v1164
    %1166 = vmatpush1.msra.mxu0 %v1165
    %1167 = vmatprep.subr.mxu0 0.0
    %v1168 = vand.u32 %v873, 4294901760
    %v1169 = vsub.f32 %v873, %v1168
    %1170 = vmatpush1.msra.mxu0 %v1169
    %1171 = vmatprep.subr.mxu0 0.0
    %v1172 = vand.u32 %v874, 4294901760
    %v1173 = vsub.f32 %v874, %v1172
    %1174 = vmatpush1.msra.mxu0 %v1173
    %1175 = vmatprep.subr.mxu0 0.0
    %v1176 = vand.u32 %v875, 4294901760
    %v1177 = vsub.f32 %v875, %v1176
    %1178 = vmatpush1.msra.mxu0 %v1177
    %1179 = vmatprep.subr.mxu0 0.0
    %v1180 = vand.u32 %v876, 4294901760
    %v1181 = vsub.f32 %v876, %v1180
    %1182 = vmatpush1.msra.mxu0 %v1181
    %1183 = vmatprep.subr.mxu0 0.0
    %1184 = vmatpush1.msra.mxu0 0.0
    %1185 = vmatprep.subr.mxu0 0.0
    %1186 = vmatpush1.msra.mxu0 0.0
    %1187 = vmatprep.subr.mxu0 0.0
    %1188 = vmatpush1.msra.mxu0 0.0
    %1189 = vmatprep.subr.mxu0 0.0
    %1190 = vmatpush1.msra.mxu0 0.0
    %1191 = vmatprep.subr.mxu0 0.0
    %1192 = vmatpush1.msra.mxu0 0.0
    %1193 = vmatprep.subr.mxu0 0.0
    %1194 = vmatpush1.msra.mxu0 0.0
    %1195 = vmatprep.subr.mxu0 0.0
    %1196 = vmatpush1.msra.mxu0 0.0
    %1197 = vmatprep.subr.mxu0 0.0
    %1198 = vmatpush1.msra.mxu0 0.0
    %1199 = vmatprep.subr.mxu0 0.0
    %1200 = vmatpush1.msra.mxu0 0.0
    %1201 = vmatprep.subr.mxu0 0.0
    %1202 = vmatpush1.msra.mxu0 0.0
    %1203 = vmatprep.subr.mxu0 0.0
    %1204 = vmatpush1.msra.mxu0 0.0
    %1205 = vmatprep.subr.mxu0 0.0
    %1206 = vmatpush1.msra.mxu0 0.0
    %1207 = vmatprep.subr.mxu0 0.0
    %1208 = vmatpush1.msra.mxu0 0.0
    %1209 = vmatprep.subr.mxu0 0.0
    %1210 = vmatpush1.msra.mxu0 0.0
    %1211 = vmatprep.subr.mxu0 0.0
    %1212 = vmatpush1.msra.mxu0 0.0
    %1213 = vmatprep.subr.mxu0 0.0
    %1214 = vmatpush1.msra.mxu0 0.0
    %1215 = vmatprep.mubr.f32.mxu0 0.0
    %v1216 = vand.u32 %v203, 4294901760
    %v1217 = vsub.f32 %v203, %v1216
    %1218 = vmatmul.mubr.f32.gmra.mrb[0].mxu0 %v1217
    %v1219 = vpop.f32.mrb[0].mxu0
    %v1220 = vadd.f32 %v1116, %v1219
    %v1221 = vpop.f32.mrb[0].mxu0
    %1222 = vdwg.mxu0
    %1223 = vmatprep.subr.mxu0 0.0
    %v1224 = vand.u32 %v861, 4294901760
    %1225 = vmatpush1.msra.mxu0 %v1224
    %1226 = vmatprep.subr.mxu0 0.0
    %v1227 = vand.u32 %v862, 4294901760
    %1228 = vmatpush1.msra.mxu0 %v1227
    %1229 = vmatprep.subr.mxu0 0.0
    %v1230 = vand.u32 %v863, 4294901760
    %1231 = vmatpush1.msra.mxu0 %v1230
    %1232 = vmatprep.subr.mxu0 0.0
    %v1233 = vand.u32 %v864, 4294901760
    %1234 = vmatpush1.msra.mxu0 %v1233
    %1235 = vmatprep.subr.mxu0 0.0
    %v1236 = vand.u32 %v865, 4294901760
    %1237 = vmatpush1.msra.mxu0 %v1236
    %1238 = vmatprep.subr.mxu0 0.0
    %v1239 = vand.u32 %v866, 4294901760
    %1240 = vmatpush1.msra.mxu0 %v1239
    %1241 = vmatprep.subr.mxu0 0.0
    %v1242 = vand.u32 %v867, 4294901760
    %1243 = vmatpush1.msra.mxu0 %v1242
    %1244 = vmatprep.subr.mxu0 0.0
    %v1245 = vand.u32 %v868, 4294901760
    %1246 = vmatpush1.msra.mxu0 %v1245
    %1247 = vmatprep.subr.mxu0 0.0
    %v1248 = vand.u32 %v869, 4294901760
    %1249 = vmatpush1.msra.mxu0 %v1248
    %1250 = vmatprep.subr.mxu0 0.0
    %v1251 = vand.u32 %v870, 4294901760
    %1252 = vmatpush1.msra.mxu0 %v1251
    %1253 = vmatprep.subr.mxu0 0.0
    %v1254 = vand.u32 %v871, 4294901760
    %1255 = vmatpush1.msra.mxu0 %v1254
    %1256 = vmatprep.subr.mxu0 0.0
    %v1257 = vand.u32 %v872, 4294901760
    %1258 = vmatpush1.msra.mxu0 %v1257
    %1259 = vmatprep.subr.mxu0 0.0
    %v1260 = vand.u32 %v873, 4294901760
    %1261 = vmatpush1.msra.mxu0 %v1260
    %1262 = vmatprep.subr.mxu0 0.0
    %v1263 = vand.u32 %v874, 4294901760
    %1264 = vmatpush1.msra.mxu0 %v1263
    %1265 = vmatprep.subr.mxu0 0.0
    %v1266 = vand.u32 %v875, 4294901760
    %1267 = vmatpush1.msra.mxu0 %v1266
    %1268 = vmatprep.subr.mxu0 0.0
    %v1269 = vand.u32 %v876, 4294901760
    %1270 = vmatpush1.msra.mxu0 %v1269
    %1271 = vmatprep.subr.mxu0 0.0
    %1272 = vmatpush1.msra.mxu0 0.0
    %1273 = vmatprep.subr.mxu0 0.0
    %1274 = vmatpush1.msra.mxu0 0.0
    %1275 = vmatprep.subr.mxu0 0.0
    %1276 = vmatpush1.msra.mxu0 0.0
    %1277 = vmatprep.subr.mxu0 0.0
    %1278 = vmatpush1.msra.mxu0 0.0
    %1279 = vmatprep.subr.mxu0 0.0
    %1280 = vmatpush1.msra.mxu0 0.0
    %1281 = vmatprep.subr.mxu0 0.0
    %1282 = vmatpush1.msra.mxu0 0.0
    %1283 = vmatprep.subr.mxu0 0.0
    %1284 = vmatpush1.msra.mxu0 0.0
    %1285 = vmatprep.subr.mxu0 0.0
    %1286 = vmatpush1.msra.mxu0 0.0
    %1287 = vmatprep.subr.mxu0 0.0
    %1288 = vmatpush1.msra.mxu0 0.0
    %1289 = vmatprep.subr.mxu0 0.0
    %1290 = vmatpush1.msra.mxu0 0.0
    %1291 = vmatprep.subr.mxu0 0.0
    %1292 = vmatpush1.msra.mxu0 0.0
    %1293 = vmatprep.subr.mxu0 0.0
    %1294 = vmatpush1.msra.mxu0 0.0
    %1295 = vmatprep.subr.mxu0 0.0
    %1296 = vmatpush1.msra.mxu0 0.0
    %1297 = vmatprep.subr.mxu0 0.0
    %1298 = vmatpush1.msra.mxu0 0.0
    %1299 = vmatprep.subr.mxu0 0.0
    %1300 = vmatpush1.msra.mxu0 0.0
    %1301 = vmatprep.subr.mxu0 0.0
    %1302 = vmatpush1.msra.mxu0 0.0
    %1303 = vmatprep.mubr.f32.mxu0 0.0
    %v1304 = vand.u32 %v203, 4294901760
    %v1305 = vsub.f32 %v203, %v1304
    %v1306 = vand.u32 %v1305, 4294901760
    %1307 = vmatmul.mubr.f32.gmra.mrb[0].mxu0 %v1306
    %v1308 = vpop.f32.mrb[0].mxu0
    %v1309 = vadd.f32 %v1220, %v1308
    %v1310 = vpop.f32.mrb[0].mxu0
    %1311 = vdwg.mxu0
    %1312 = vmatprep.subr.mxu0 0.0
    %v1313 = vand.u32 %v861, 4294901760
    %v1314 = vsub.f32 %v861, %v1313
    %v1315 = vand.u32 %v1314, 4294901760
    %1316 = vmatpush1.msra.mxu0 %v1315
    %1317 = vmatprep.subr.mxu0 0.0
    %v1318 = vand.u32 %v862, 4294901760
    %v1319 = vsub.f32 %v862, %v1318
    %v1320 = vand.u32 %v1319, 4294901760
    %1321 = vmatpush1.msra.mxu0 %v1320
    %1322 = vmatprep.subr.mxu0 0.0
    %v1323 = vand.u32 %v863, 4294901760
    %v1324 = vsub.f32 %v863, %v1323
    %v1325 = vand.u32 %v1324, 4294901760
    %1326 = vmatpush1.msra.mxu0 %v1325
    %1327 = vmatprep.subr.mxu0 0.0
    %v1328 = vand.u32 %v864, 4294901760
    %v1329 = vsub.f32 %v864, %v1328
    %v1330 = vand.u32 %v1329, 4294901760
    %1331 = vmatpush1.msra.mxu0 %v1330
    %1332 = vmatprep.subr.mxu0 0.0
    %v1333 = vand.u32 %v865, 4294901760
    %v1334 = vsub.f32 %v865, %v1333
    %v1335 = vand.u32 %v1334, 4294901760
    %1336 = vmatpush1.msra.mxu0 %v1335
    %1337 = vmatprep.subr.mxu0 0.0
    %v1338 = vand.u32 %v866, 4294901760
    %v1339 = vsub.f32 %v866, %v1338
    %v1340 = vand.u32 %v1339, 4294901760
    %1341 = vmatpush1.msra.mxu0 %v1340
    %1342 = vmatprep.subr.mxu0 0.0
    %v1343 = vand.u32 %v867, 4294901760
    %v1344 = vsub.f32 %v867, %v1343
    %v1345 = vand.u32 %v1344, 4294901760
    %1346 = vmatpush1.msra.mxu0 %v1345
    %1347 = vmatprep.subr.mxu0 0.0
    %v1348 = vand.u32 %v868, 4294901760
    %v1349 = vsub.f32 %v868, %v1348
    %v1350 = vand.u32 %v1349, 4294901760
    %1351 = vmatpush1.msra.mxu0 %v1350
    %1352 = vmatprep.subr.mxu0 0.0
    %v1353 = vand.u32 %v869, 4294901760
    %v1354 = vsub.f32 %v869, %v1353
    %v1355 = vand.u32 %v1354, 4294901760
    %1356 = vmatpush1.msra.mxu0 %v1355
    %1357 = vmatprep.subr.mxu0 0.0
    %v1358 = vand.u32 %v870, 4294901760
    %v1359 = vsub.f32 %v870, %v1358
    %v1360 = vand.u32 %v1359, 4294901760
    %1361 = vmatpush1.msra.mxu0 %v1360
    %1362 = vmatprep.subr.mxu0 0.0
    %v1363 = vand.u32 %v871, 4294901760
    %v1364 = vsub.f32 %v871, %v1363
    %v1365 = vand.u32 %v1364, 4294901760
    %1366 = vmatpush1.msra.mxu0 %v1365
    %1367 = vmatprep.subr.mxu0 0.0
    %v1368 = vand.u32 %v872, 4294901760
    %v1369 = vsub.f32 %v872, %v1368
    %v1370 = vand.u32 %v1369, 4294901760
    %1371 = vmatpush1.msra.mxu0 %v1370
    %1372 = vmatprep.subr.mxu0 0.0
    %v1373 = vand.u32 %v873, 4294901760
    %v1374 = vsub.f32 %v873, %v1373
    %v1375 = vand.u32 %v1374, 4294901760
    %1376 = vmatpush1.msra.mxu0 %v1375
    %1377 = vmatprep.subr.mxu0 0.0
    %v1378 = vand.u32 %v874, 4294901760
    %v1379 = vsub.f32 %v874, %v1378
    %v1380 = vand.u32 %v1379, 4294901760
    %1381 = vmatpush1.msra.mxu0 %v1380
    %1382 = vmatprep.subr.mxu0 0.0
    %v1383 = vand.u32 %v875, 4294901760
    %v1384 = vsub.f32 %v875, %v1383
    %v1385 = vand.u32 %v1384, 4294901760
    %1386 = vmatpush1.msra.mxu0 %v1385
    %1387 = vmatprep.subr.mxu0 0.0
    %v1388 = vand.u32 %v876, 4294901760
    %v1389 = vsub.f32 %v876, %v1388
    %v1390 = vand.u32 %v1389, 4294901760
    %1391 = vmatpush1.msra.mxu0 %v1390
    %1392 = vmatprep.subr.mxu0 0.0
    %1393 = vmatpush1.msra.mxu0 0.0
    %1394 = vmatprep.subr.mxu0 0.0
    %1395 = vmatpush1.msra.mxu0 0.0
    %1396 = vmatprep.subr.mxu0 0.0
    %1397 = vmatpush1.msra.mxu0 0.0
    %1398 = vmatprep.subr.mxu0 0.0
    %1399 = vmatpush1.msra.mxu0 0.0
    %1400 = vmatprep.subr.mxu0 0.0
    %1401 = vmatpush1.msra.mxu0 0.0
    %1402 = vmatprep.subr.mxu0 0.0
    %1403 = vmatpush1.msra.mxu0 0.0
    %1404 = vmatprep.subr.mxu0 0.0
    %1405 = vmatpush1.msra.mxu0 0.0
    %1406 = vmatprep.subr.mxu0 0.0
    %1407 = vmatpush1.msra.mxu0 0.0
    %1408 = vmatprep.subr.mxu0 0.0
    %1409 = vmatpush1.msra.mxu0 0.0
    %1410 = vmatprep.subr.mxu0 0.0
    %1411 = vmatpush1.msra.mxu0 0.0
    %1412 = vmatprep.subr.mxu0 0.0
    %1413 = vmatpush1.msra.mxu0 0.0
    %1414 = vmatprep.subr.mxu0 0.0
    %1415 = vmatpush1.msra.mxu0 0.0
    %1416 = vmatprep.subr.mxu0 0.0
    %1417 = vmatpush1.msra.mxu0 0.0
    %1418 = vmatprep.subr.mxu0 0.0
    %1419 = vmatpush1.msra.mxu0 0.0
    %1420 = vmatprep.subr.mxu0 0.0
    %1421 = vmatpush1.msra.mxu0 0.0
    %1422 = vmatprep.subr.mxu0 0.0
    %1423 = vmatpush1.msra.mxu0 0.0
    %1424 = vmatprep.mubr.f32.mxu0 0.0
    %v1425 = vand.u32 %v203, 4294901760
    %1426 = vmatmul.mubr.f32.gmra.mrb[0].mxu0 %v1425
    %v1427 = vpop.f32.mrb[0].mxu0
    %v1428 = vadd.f32 %v1309, %v1427
    %v1429 = vpop.f32.mrb[0].mxu0
    %1430 = vdwg.mxu0
    %1431 = vmatprep.subr.mxu0 0.0
    %v1432 = vand.u32 %v861, 4294901760
    %1433 = vmatpush1.msra.mxu0 %v1432
    %1434 = vmatprep.subr.mxu0 0.0
    %v1435 = vand.u32 %v862, 4294901760
    %1436 = vmatpush1.msra.mxu0 %v1435
    %1437 = vmatprep.subr.mxu0 0.0
    %v1438 = vand.u32 %v863, 4294901760
    %1439 = vmatpush1.msra.mxu0 %v1438
    %1440 = vmatprep.subr.mxu0 0.0
    %v1441 = vand.u32 %v864, 4294901760
    %1442 = vmatpush1.msra.mxu0 %v1441
    %1443 = vmatprep.subr.mxu0 0.0
    %v1444 = vand.u32 %v865, 4294901760
    %1445 = vmatpush1.msra.mxu0 %v1444
    %1446 = vmatprep.subr.mxu0 0.0
    %v1447 = vand.u32 %v866, 4294901760
    %1448 = vmatpush1.msra.mxu0 %v1447
    %1449 = vmatprep.subr.mxu0 0.0
    %v1450 = vand.u32 %v867, 4294901760
    %1451 = vmatpush1.msra.mxu0 %v1450
    %1452 = vmatprep.subr.mxu0 0.0
    %v1453 = vand.u32 %v868, 4294901760
    %1454 = vmatpush1.msra.mxu0 %v1453
    %1455 = vmatprep.subr.mxu0 0.0
    %v1456 = vand.u32 %v869, 4294901760
    %1457 = vmatpush1.msra.mxu0 %v1456
    %1458 = vmatprep.subr.mxu0 0.0
    %v1459 = vand.u32 %v870, 4294901760
    %1460 = vmatpush1.msra.mxu0 %v1459
    %1461 = vmatprep.subr.mxu0 0.0
    %v1462 = vand.u32 %v871, 4294901760
    %1463 = vmatpush1.msra.mxu0 %v1462
    %1464 = vmatprep.subr.mxu0 0.0
    %v1465 = vand.u32 %v872, 4294901760
    %1466 = vmatpush1.msra.mxu0 %v1465
    %1467 = vmatprep.subr.mxu0 0.0
    %v1468 = vand.u32 %v873, 4294901760
    %1469 = vmatpush1.msra.mxu0 %v1468
    %1470 = vmatprep.subr.mxu0 0.0
    %v1471 = vand.u32 %v874, 4294901760
    %1472 = vmatpush1.msra.mxu0 %v1471
    %1473 = vmatprep.subr.mxu0 0.0
    %v1474 = vand.u32 %v875, 4294901760
    %1475 = vmatpush1.msra.mxu0 %v1474
    %1476 = vmatprep.subr.mxu0 0.0
    %v1477 = vand.u32 %v876, 4294901760
    %1478 = vmatpush1.msra.mxu0 %v1477
    %1479 = vmatprep.subr.mxu0 0.0
    %1480 = vmatpush1.msra.mxu0 0.0
    %1481 = vmatprep.subr.mxu0 0.0
    %1482 = vmatpush1.msra.mxu0 0.0
    %1483 = vmatprep.subr.mxu0 0.0
    %1484 = vmatpush1.msra.mxu0 0.0
    %1485 = vmatprep.subr.mxu0 0.0
    %1486 = vmatpush1.msra.mxu0 0.0
    %1487 = vmatprep.subr.mxu0 0.0
    %1488 = vmatpush1.msra.mxu0 0.0
    %1489 = vmatprep.subr.mxu0 0.0
    %1490 = vmatpush1.msra.mxu0 0.0
    %1491 = vmatprep.subr.mxu0 0.0
    %1492 = vmatpush1.msra.mxu0 0.0
    %1493 = vmatprep.subr.mxu0 0.0
    %1494 = vmatpush1.msra.mxu0 0.0
    %1495 = vmatprep.subr.mxu0 0.0
    %1496 = vmatpush1.msra.mxu0 0.0
    %1497 = vmatprep.subr.mxu0 0.0
    %1498 = vmatpush1.msra.mxu0 0.0
    %1499 = vmatprep.subr.mxu0 0.0
    %1500 = vmatpush1.msra.mxu0 0.0
    %1501 = vmatprep.subr.mxu0 0.0
    %1502 = vmatpush1.msra.mxu0 0.0
    %1503 = vmatprep.subr.mxu0 0.0
    %1504 = vmatpush1.msra.mxu0 0.0
    %1505 = vmatprep.subr.mxu0 0.0
    %1506 = vmatpush1.msra.mxu0 0.0
    %1507 = vmatprep.subr.mxu0 0.0
    %1508 = vmatpush1.msra.mxu0 0.0
    %1509 = vmatprep.subr.mxu0 0.0
    %1510 = vmatpush1.msra.mxu0 0.0
    %1511 = vmatprep.mubr.f32.mxu0 0.0
    %v1512 = vand.u32 %v203, 4294901760
    %1513 = vmatmul.mubr.f32.gmra.mrb[0].mxu0 %v1512
    %v1514 = vpop.f32.mrb[0].mxu0
    %v1515 = vadd.f32 %v1428, %v1514
    %v1516 = vpop.f32.mrb[0].mxu0
    %1517 = vdwg.mxu0
    %vm1518 = vcmp.lt.s32.totalorder %v72, 32
    %v1519 = vmul.f32 %v858, %v858
    %v1520 = vsub.f32 %v1519, %v1515
    %v1521 = vsel %vm1518, %v1520, 0.0
    %1522 = vadd.xlane.f32.xlu0 %v1521
    %v1523 = vpop.xlane.xlu0 %1522
    %v1524 = vmul.f32 %v1523, 0.5
    %vm1525 = vcmp.eq.s32.totalorder %v72, 32
    %v1526 = vsel %vm1525, %v1524, 0.0
    %v1527 = vadd.f32 %v858, %v1526
    %1528 = vst [vmem:[#allocation10] sm:$0xff] %v1527
    // Predicated region
    $region34: #{tpu_custom_call.1} parent=1 // pred_check
      _
    $region35: #{tpu_custom_call.1} parent=1 // pred_check_branch
      %1530 = sbr.rel (0) target = $region37
    $region36: #{tpu_custom_call.1} parent=1 // pred_region
      %s1532 = ssub.s32 128, 128
      %1533 = vsyncadd [#allocation4], %s1532
      %s1535 = sshll.u32 [#allocation10], 4
      %s1536 = int_to_ptr.vmem [resolvable:$true] %s1535
      %1538 = dma.vmem_to_hbm [thread:$0]  %s1536, 128, %s4, [#allocation4]
    $region37: #{tpu_custom_call.1} parent=1 // pred_fallthru
      _
    // Predicated region
    $region38: #{tpu_custom_call.1} parent=1 // pred_check
      _
    $region39: #{tpu_custom_call.1} parent=1 // pred_check_branch
      %1540 = sbr.rel (0) target = $region41
    $region40: #{tpu_custom_call.1} parent=1 // pred_region
      %1541 = dma.done [#allocation4], 128
    $region41: #{tpu_custom_call.1} parent=1 // pred_fallthru
      _
    %1542 = vsyncpa [#allocation3], 1
    %1543 = vsyncpa [#allocation6], 1
    %1544 = vsyncpa [#allocation9], 1
    %1545 = vsyncpa [#allocation4], 1

</llo_original>
